<compile_context>
chip_gen: v7x
topology: tpu7x:2x2x1
jax: 0.10.0
libtpu: 0.0.40
codegen_flags: <defaults>
</compile_context>

<pallas_src>
import functools

import jax
import jax.numpy as jnp
import numpy as np
from jax.experimental import pallas as pl
from jax.experimental.pallas import tpu as pltpu


def _round_up(n, m):
    return -(-n // m) * m


def _lstm_fc_kernel(num_layers, hidden_size, seq_len, b_pad, dot_dtype, *refs):
    """refs = (x_tm,
               w_ih0_t, w_hh0_t, bias0,             # layer 0
               [w_cat_l, bias_l] * (num_layers-1),  # layers >= 1 (fused [w_ih; w_hh])
               fc_w_pad, fc_b_pad, out)

    x_tm     : (T*Bp, D0)        bf16, time-major, batch padded to Bp
    w_ih0_t  : (D0, 4H)          bf16
    w_hh0_t  : (H, 4H)           bf16
    bias0    : (1, 4H)           f32  (b_ih + b_hh)
    w_cat_l  : (2H, 4H)          bf16  ([w_ih_l^T ; w_hh_l^T])
    bias_l   : (1, 4H)           f32
    fc_w_pad : (H, Cp)           bf16  (zero-padded lane-dense)
    fc_b_pad : (1, Cp)           f32
    out      : (num_layers*Bp, Cp) f32
    Gate column order is PyTorch's (i, f, g, o).
    """
    H, T, Bp, L = hidden_size, seq_len, b_pad, num_layers
    f32 = jnp.float32

    x = refs[0][...]
    wih0 = refs[1][...]
    whh0 = refs[2][...]
    bias0 = refs[3][...]
    idx = 4
    upper = []  # (w_cat, bias broadcast to (Bp, 4H)) for layers >= 1, hoisted
    for _ in range(1, L):
        w_cat = refs[idx][...]
        bias_b = jnp.broadcast_to(refs[idx + 1][...], (Bp, 4 * H))
        upper.append((w_cat, bias_b))
        idx += 2
    fcw = refs[idx][...]
    fcb = refs[idx + 1][...]
    out_ref = refs[idx + 2]

    # Layer-0 input projection for the whole sequence: one batched MXU matmul,
    # off the serial recurrence chain; fused bias folded in once.
    proj0 = jnp.dot(x, wih0, preferred_element_type=f32) + bias0        # (T*Bp, 4H)

    def cell(gates, c_prev):
        # Full-vreg nonlinearities: exactly one sigmoid + one tanh EUP push.
        sig = jax.nn.sigmoid(gates)                                     # (Bp, 4H)
        tnh = jnp.tanh(gates)                                           # (Bp, 4H)
        i_g = sig[:, :H]                                                # lanes 0:H
        f_g = pltpu.roll(sig, 3 * H, 1)[:, :H]                          # lanes H:2H
        g_g = pltpu.roll(tnh, 2 * H, 1)[:, :H]                          # lanes 2H:3H
        o_g = pltpu.roll(sig, 1 * H, 1)[:, :H]                          # lanes 3H:4H
        c_new = f_g * c_prev + i_g * g_g
        h_new = o_g * jnp.tanh(c_new)
        return h_new, c_new

    h = [jnp.zeros((Bp, H), f32) for _ in range(L)]
    c = [jnp.zeros((Bp, H), f32) for _ in range(L)]

    # Wavefront schedule: at diagonal step s, layer l advances to t = s - l.
    # Cells on one diagonal are independent, so their MXU/EUP work pipelines.
    # TODO(synk): optionally pin w_hh0 in MXU staging regs via
    # pltpu.matmul_push_rhs / matmul_acc_lhs / matmul_pop to avoid re-streaming
    # the recurrent RHS on every unrolled step.
    for s in range(T + L - 1):
        updates = []
        for l in range(L):
            t = s - l
            if not (0 <= t < T):
                continue
            if l == 0:
                gates = proj0[t * Bp:(t + 1) * Bp, :] + jnp.dot(
                    h[0].astype(dot_dtype), whh0, preferred_element_type=f32)
            else:
                w_cat, bias_b = upper[l - 1]
                lhs = jnp.concatenate([h[l - 1], h[l]], axis=1).astype(dot_dtype)
                gates = jnp.dot(lhs, w_cat, preferred_element_type=f32) + bias_b
            updates.append((l,) + cell(gates, c[l]))
        for l, h_new, c_new in updates:   # commit after the whole diagonal
            h[l], c[l] = h_new, c_new

    # h_n.view(-1, H) == layer-major concatenation of the final hidden states.
    h_out = jnp.concatenate(h, axis=0).astype(dot_dtype)                # (L*Bp, H)
    out = jnp.dot(h_out, fcw, preferred_element_type=f32) + fcb         # (L*Bp, Cp)
    out_ref[...] = out.astype(out_ref.dtype)                            # unmasked store


def prepare_params(params, dot_dtype=jnp.bfloat16):
    """One-time parameter prep (hoisted out of the per-call path): transpose to
    (in, 4H), fuse biases, fuse [w_ih; w_hh] for layers >= 1 (wavefront uses a
    single (Bp,2H)@(2H,4H) dot), zero-pad the fc to a lane-dense output, and
    cast MXU operands to bf16."""
    L = params["num_layers"]
    H = params["hidden_size"]
    C = params["num_classes"]
    Cp = _round_up(C, 128)

    prepped = []
    for l in range(L):
        w_ih_t = jnp.asarray(params["w_ih"][l]).T.astype(dot_dtype)      # (D_l, 4H)
        w_hh_t = jnp.asarray(params["w_hh"][l]).T.astype(dot_dtype)      # (H, 4H)
        bias = (params["b_ih"][l] + params["b_hh"][l]).reshape(1, 4 * H).astype(jnp.float32)
        if l == 0:
            prepped += [w_ih_t, w_hh_t, bias]
        else:
            prepped += [jnp.concatenate([w_ih_t, w_hh_t], axis=0), bias]  # (2H, 4H)
    fc_w_t = jnp.asarray(params["fc_w"]).T.astype(dot_dtype)              # (H, C)
    fc_w_pad = jnp.zeros((H, Cp), dot_dtype).at[:, :C].set(fc_w_t)
    fc_b_pad = jnp.zeros((1, Cp), jnp.float32).at[:, :C].set(
        jnp.asarray(params["fc_b"]).reshape(1, C))
    prepped += [fc_w_pad, fc_b_pad]
    return tuple(jax.device_put(p) for p in prepped)


def lstm_predictor_forward(x, prepped, *, num_layers, hidden_size, num_classes):
    """Pallas forward pass equivalent to LSTMPredictor.forward(x):
    fc(h_n.view(-1, hidden_size)) -> (num_layers * B, num_classes)."""
    B, T, D0 = x.shape
    Bp = _round_up(max(B, 8), 8)          # f32 sublane tile
    Cp = _round_up(num_classes, 128)      # lane-dense output slab

    # Time-major, batch padded to Bp, pre-cast to bf16: per-timestep data is an
    # aligned leading row block and the kernel never re-casts the input.
    x_tm = jnp.transpose(x, (1, 0, 2))                                   # (T, B, D0)
    x_tm = jnp.pad(x_tm, ((0, 0), (0, Bp - B), (0, 0)))
    x_tm = x_tm.reshape(T * Bp, D0).astype(jnp.bfloat16)

    kernel = functools.partial(_lstm_fc_kernel, num_layers, hidden_size, T, Bp,
                               jnp.bfloat16)
    args = (x_tm,) + tuple(prepped)
    # Problem is tiny (<100 KB total): no grid, every operand resident in VMEM.
    # TODO(synk): if ever run at real batch, add a "parallel" grid axis over
    # batch chunks (uses both v7x TensorCores) and re-budget VMEM (64 MiB v7x).
    out_full = pl.pallas_call(
        kernel,
        out_shape=jax.ShapeDtypeStruct((num_layers * Bp, Cp), jnp.float32),
        in_specs=[pl.BlockSpec(memory_space=pltpu.MemorySpace.VMEM)] * len(args),
        out_specs=pl.BlockSpec(memory_space=pltpu.MemorySpace.VMEM),
    )(*args)

    out = out_full.reshape(num_layers, Bp, Cp)[:, :B, :num_classes]
    return out.reshape(num_layers * B, num_classes)


def _reference_forward(x, params):
    """Pure-JAX f32 reference (same math as torch nn.LSTM + Linear)."""
    num_layers = params["num_layers"]
    H = params["hidden_size"]
    B, T, _ = x.shape
    h = [jnp.zeros((B, H), jnp.float32) for _ in range(num_layers)]
    c = [jnp.zeros((B, H), jnp.float32) for _ in range(num_layers)]
    for t in range(T):
        inp = x[:, t, :]
        for l in range(num_layers):
            gates = (inp @ params["w_ih"][l].T + params["b_ih"][l]
                     + h[l] @ params["w_hh"][l].T + params["b_hh"][l])
            i_g = jax.nn.sigmoid(gates[:, 0 * H:1 * H])
            f_g = jax.nn.sigmoid(gates[:, 1 * H:2 * H])
            g_g = jnp.tanh(gates[:, 2 * H:3 * H])
            o_g = jax.nn.sigmoid(gates[:, 3 * H:4 * H])
            c[l] = f_g * c[l] + i_g * g_g
            h[l] = o_g * jnp.tanh(c[l])
            inp = h[l]
    h_out = jnp.concatenate(h, axis=0)
    return h_out @ params["fc_w"].T + params["fc_b"]


def init_params(key, num_classes, input_size, hidden_size, num_layers):
    """Deterministic init mirroring PyTorch's U(-1/sqrt(H), 1/sqrt(H))."""
    k = 1.0 / np.sqrt(hidden_size)
    keys = jax.random.split(key, 4 * num_layers + 2)
    w_ih, w_hh, b_ih, b_hh = [], [], [], []
    for l in range(num_layers):
        d_in = input_size if l == 0 else hidden_size
        w_ih.append(jax.random.uniform(keys[4 * l + 0], (4 * hidden_size, d_in),
                                       jnp.float32, -k, k))
        w_hh.append(jax.random.uniform(keys[4 * l + 1], (4 * hidden_size, hidden_size),
                                       jnp.float32, -k, k))
        b_ih.append(jax.random.uniform(keys[4 * l + 2], (4 * hidden_size,),
                                       jnp.float32, -k, k))
        b_hh.append(jax.random.uniform(keys[4 * l + 3], (4 * hidden_size,),
                                       jnp.float32, -k, k))
    fc_w = jax.random.uniform(keys[-2], (num_classes, hidden_size), jnp.float32, -k, k)
    fc_b = jax.random.uniform(keys[-1], (num_classes,), jnp.float32, -k, k)
    return dict(num_layers=num_layers, hidden_size=hidden_size,
                num_classes=num_classes, w_ih=w_ih, w_hh=w_hh,
                b_ih=b_ih, b_hh=b_hh, fc_w=fc_w, fc_b=fc_b)


if __name__ == "__main__":
    # Small shapes consistent with LSTMPredictor:
    #   num_classes=4, input_size=4, hidden_size=32, num_layers=2, lookback_len=8
    batch, seq_len = 2, 8
    num_classes, input_size, hidden_size, num_layers = 4, 4, 32, 2

    key = jax.random.PRNGKey(0)
    k_x, k_p = jax.random.split(key)
    x = jax.random.normal(k_x, (batch, seq_len, input_size), jnp.float32)
    params = init_params(k_p, num_classes, input_size, hidden_size, num_layers)

    # One-time, cached parameter prep (transposes / weight+bias fusion / padding / bf16).
    prepped = prepare_params(params)

    fwd = jax.jit(functools.partial(lstm_predictor_forward,
                                    num_layers=num_layers,
                                    hidden_size=hidden_size,
                                    num_classes=num_classes))
    out = jax.block_until_ready(fwd(x, prepped))

    ref = _reference_forward(x, params)
    assert out.shape == (num_layers * batch, num_classes)
    # bf16 MXU operands with f32 accumulation vs. a pure-f32 reference.
    np.testing.assert_allclose(np.asarray(out), np.asarray(ref), rtol=2e-2, atol=2e-2)

    print("KERNEL_OK")
</pallas_src>

<mosaic_0001>
module attributes {stable_mosaic.version = 11 : i64} {
  func.func @_lstm_fc_kernel(%arg0: memref<64x4xbf16, #tpu.memory_space<vmem>>, %arg1: memref<4x128xbf16, #tpu.memory_space<vmem>>, %arg2: memref<32x128xbf16, #tpu.memory_space<vmem>>, %arg3: memref<1x128xf32, #tpu.memory_space<vmem>>, %arg4: memref<64x128xbf16, #tpu.memory_space<vmem>>, %arg5: memref<1x128xf32, #tpu.memory_space<vmem>>, %arg6: memref<32x128xbf16, #tpu.memory_space<vmem>>, %arg7: memref<1x128xf32, #tpu.memory_space<vmem>>, %arg8: memref<16x128xf32, #tpu.memory_space<vmem>>) attributes {dimension_semantics = [], scalar_prefetch = 0 : i64, scratch_operands = 0 : i64, tpu.core_type = #tpu.core_type<tc>} {
    %c0 = arith.constant 0 : index
    %c0_0 = arith.constant 0 : index
    %0 = vector.load %arg0[%c0, %c0_0] : memref<64x4xbf16, #tpu.memory_space<vmem>>, vector<64x4xbf16>
    %c0_1 = arith.constant 0 : index
    %c0_2 = arith.constant 0 : index
    %1 = vector.load %arg1[%c0_1, %c0_2] : memref<4x128xbf16, #tpu.memory_space<vmem>>, vector<4x128xbf16>
    %c0_3 = arith.constant 0 : index
    %c0_4 = arith.constant 0 : index
    %2 = vector.load %arg2[%c0_3, %c0_4] : memref<32x128xbf16, #tpu.memory_space<vmem>>, vector<32x128xbf16>
    %c0_5 = arith.constant 0 : index
    %c0_6 = arith.constant 0 : index
    %3 = vector.load %arg3[%c0_5, %c0_6] : memref<1x128xf32, #tpu.memory_space<vmem>>, vector<1x128xf32>
    %c0_7 = arith.constant 0 : index
    %c0_8 = arith.constant 0 : index
    %4 = vector.load %arg4[%c0_7, %c0_8] : memref<64x128xbf16, #tpu.memory_space<vmem>>, vector<64x128xbf16>
    %c0_9 = arith.constant 0 : index
    %c0_10 = arith.constant 0 : index
    %5 = vector.load %arg5[%c0_9, %c0_10] : memref<1x128xf32, #tpu.memory_space<vmem>>, vector<1x128xf32>
    %6 = vector.shape_cast %5 : vector<1x128xf32> to vector<1x128xf32>
    %7 = vector.broadcast %6 : vector<1x128xf32> to vector<8x128xf32>
    %c0_11 = arith.constant 0 : index
    %c0_12 = arith.constant 0 : index
    %8 = vector.load %arg6[%c0_11, %c0_12] : memref<32x128xbf16, #tpu.memory_space<vmem>>, vector<32x128xbf16>
    %c0_13 = arith.constant 0 : index
    %c0_14 = arith.constant 0 : index
    %9 = vector.load %arg7[%c0_13, %c0_14] : memref<1x128xf32, #tpu.memory_space<vmem>>, vector<1x128xf32>
    %cst = arith.constant dense<0.000000e+00> : vector<64x128xf32>
    %10 = tpu.matmul %0, %1, %cst {dimension_numbers = #tpu.dot_dimension_numbers<[1], [0], [0], [1], [0, 0, 1, 1], [], []>} : vector<64x4xbf16>, vector<4x128xbf16>, vector<64x128xf32> -> vector<64x128xf32>
    %11 = vector.broadcast %3 : vector<1x128xf32> to vector<64x128xf32>
    %12 = arith.addf %10, %11 : vector<64x128xf32>
    %cst_15 = arith.constant 0.000000e+00 : f32
    %13 = vector.broadcast %cst_15 : f32 to vector<8x32xf32>
    %cst_16 = arith.constant 0.000000e+00 : f32
    %14 = vector.broadcast %cst_16 : f32 to vector<8x32xf32>
    %cst_17 = arith.constant 0.000000e+00 : f32
    %15 = vector.broadcast %cst_17 : f32 to vector<8x32xf32>
    %cst_18 = arith.constant 0.000000e+00 : f32
    %16 = vector.broadcast %cst_18 : f32 to vector<8x32xf32>
    %17 = vector.extract_strided_slice %12 {offsets = [0, 0], sizes = [8, 128], strides = [1, 1]} : vector<64x128xf32> to vector<8x128xf32>
    %18 = arith.truncf %13 : vector<8x32xf32> to vector<8x32xbf16>
    %cst_19 = arith.constant dense<0.000000e+00> : vector<8x128xf32>
    %19 = tpu.matmul %18, %2, %cst_19 {dimension_numbers = #tpu.dot_dimension_numbers<[1], [0], [0], [1], [0, 0, 1, 1], [], []>} : vector<8x32xbf16>, vector<32x128xbf16>, vector<8x128xf32> -> vector<8x128xf32>
    %20 = arith.addf %17, %19 : vector<8x128xf32>
    %21 = arith.negf %20 : vector<8x128xf32>
    %22 = math.exp %21 : vector<8x128xf32>
    %cst_20 = arith.constant 1.000000e+00 : f32
    %23 = vector.broadcast %cst_20 : f32 to vector<8x128xf32>
    %24 = arith.addf %23, %22 : vector<8x128xf32>
    %25 = arith.divf %23, %24 : vector<8x128xf32>
    %26 = math.tanh %20 : vector<8x128xf32>
    %27 = vector.extract_strided_slice %25 {offsets = [0, 0], sizes = [8, 32], strides = [1, 1]} : vector<8x128xf32> to vector<8x32xf32>
    %c96_i32 = arith.constant 96 : i32
    %28 = tpu.dynamic_rotate %25 by %c96_i32 dim 1 : vector<8x128xf32>, i32 -> vector<8x128xf32>
    %29 = vector.extract_strided_slice %28 {offsets = [0, 0], sizes = [8, 32], strides = [1, 1]} : vector<8x128xf32> to vector<8x32xf32>
    %c64_i32 = arith.constant 64 : i32
    %30 = tpu.dynamic_rotate %26 by %c64_i32 dim 1 : vector<8x128xf32>, i32 -> vector<8x128xf32>
    %31 = vector.extract_strided_slice %30 {offsets = [0, 0], sizes = [8, 32], strides = [1, 1]} : vector<8x128xf32> to vector<8x32xf32>
    %c32_i32 = arith.constant 32 : i32
    %32 = tpu.dynamic_rotate %25 by %c32_i32 dim 1 : vector<8x128xf32>, i32 -> vector<8x128xf32>
    %33 = vector.extract_strided_slice %32 {offsets = [0, 0], sizes = [8, 32], strides = [1, 1]} : vector<8x128xf32> to vector<8x32xf32>
    %34 = arith.mulf %29, %15 : vector<8x32xf32>
    %35 = arith.mulf %27, %31 : vector<8x32xf32>
    %36 = arith.addf %34, %35 : vector<8x32xf32>
    %37 = math.tanh %36 : vector<8x32xf32>
    %38 = arith.mulf %33, %37 : vector<8x32xf32>
    %39 = vector.extract_strided_slice %12 {offsets = [8, 0], sizes = [8, 128], strides = [1, 1]} : vector<64x128xf32> to vector<8x128xf32>
    %40 = arith.truncf %38 : vector<8x32xf32> to vector<8x32xbf16>
    %cst_21 = arith.constant dense<0.000000e+00> : vector<8x128xf32>
    %41 = tpu.matmul %40, %2, %cst_21 {dimension_numbers = #tpu.dot_dimension_numbers<[1], [0], [0], [1], [0, 0, 1, 1], [], []>} : vector<8x32xbf16>, vector<32x128xbf16>, vector<8x128xf32> -> vector<8x128xf32>
    %42 = arith.addf %39, %41 : vector<8x128xf32>
    %43 = arith.negf %42 : vector<8x128xf32>
    %44 = math.exp %43 : vector<8x128xf32>
    %cst_22 = arith.constant 1.000000e+00 : f32
    %45 = vector.broadcast %cst_22 : f32 to vector<8x128xf32>
    %46 = arith.addf %45, %44 : vector<8x128xf32>
    %47 = arith.divf %45, %46 : vector<8x128xf32>
    %48 = math.tanh %42 : vector<8x128xf32>
    %49 = vector.extract_strided_slice %47 {offsets = [0, 0], sizes = [8, 32], strides = [1, 1]} : vector<8x128xf32> to vector<8x32xf32>
    %c96_i32_23 = arith.constant 96 : i32
    %50 = tpu.dynamic_rotate %47 by %c96_i32_23 dim 1 : vector<8x128xf32>, i32 -> vector<8x128xf32>
    %51 = vector.extract_strided_slice %50 {offsets = [0, 0], sizes = [8, 32], strides = [1, 1]} : vector<8x128xf32> to vector<8x32xf32>
    %c64_i32_24 = arith.constant 64 : i32
    %52 = tpu.dynamic_rotate %48 by %c64_i32_24 dim 1 : vector<8x128xf32>, i32 -> vector<8x128xf32>
    %53 = vector.extract_strided_slice %52 {offsets = [0, 0], sizes = [8, 32], strides = [1, 1]} : vector<8x128xf32> to vector<8x32xf32>
    %c32_i32_25 = arith.constant 32 : i32
    %54 = tpu.dynamic_rotate %47 by %c32_i32_25 dim 1 : vector<8x128xf32>, i32 -> vector<8x128xf32>
    %55 = vector.extract_strided_slice %54 {offsets = [0, 0], sizes = [8, 32], strides = [1, 1]} : vector<8x128xf32> to vector<8x32xf32>
    %56 = arith.mulf %51, %36 : vector<8x32xf32>
    %57 = arith.mulf %49, %53 : vector<8x32xf32>
    %58 = arith.addf %56, %57 : vector<8x32xf32>
    %59 = math.tanh %58 : vector<8x32xf32>
    %60 = arith.mulf %55, %59 : vector<8x32xf32>
    %61 = tpu.concatenate %38, %14 in 1 : vector<8x32xf32>, vector<8x32xf32> -> vector<8x64xf32>
    %62 = arith.truncf %61 : vector<8x64xf32> to vector<8x64xbf16>
    %cst_26 = arith.constant dense<0.000000e+00> : vector<8x128xf32>
    %63 = tpu.matmul %62, %4, %cst_26 {dimension_numbers = #tpu.dot_dimension_numbers<[1], [0], [0], [1], [0, 0, 1, 1], [], []>} : vector<8x64xbf16>, vector<64x128xbf16>, vector<8x128xf32> -> vector<8x128xf32>
    %64 = arith.addf %63, %7 : vector<8x128xf32>
    %65 = arith.negf %64 : vector<8x128xf32>
    %66 = math.exp %65 : vector<8x128xf32>
    %cst_27 = arith.constant 1.000000e+00 : f32
    %67 = vector.broadcast %cst_27 : f32 to vector<8x128xf32>
    %68 = arith.addf %67, %66 : vector<8x128xf32>
    %69 = arith.divf %67, %68 : vector<8x128xf32>
    %70 = math.tanh %64 : vector<8x128xf32>
    %71 = vector.extract_strided_slice %69 {offsets = [0, 0], sizes = [8, 32], strides = [1, 1]} : vector<8x128xf32> to vector<8x32xf32>
    %c96_i32_28 = arith.constant 96 : i32
    %72 = tpu.dynamic_rotate %69 by %c96_i32_28 dim 1 : vector<8x128xf32>, i32 -> vector<8x128xf32>
    %73 = vector.extract_strided_slice %72 {offsets = [0, 0], sizes = [8, 32], strides = [1, 1]} : vector<8x128xf32> to vector<8x32xf32>
    %c64_i32_29 = arith.constant 64 : i32
    %74 = tpu.dynamic_rotate %70 by %c64_i32_29 dim 1 : vector<8x128xf32>, i32 -> vector<8x128xf32>
    %75 = vector.extract_strided_slice %74 {offsets = [0, 0], sizes = [8, 32], strides = [1, 1]} : vector<8x128xf32> to vector<8x32xf32>
    %c32_i32_30 = arith.constant 32 : i32
    %76 = tpu.dynamic_rotate %69 by %c32_i32_30 dim 1 : vector<8x128xf32>, i32 -> vector<8x128xf32>
    %77 = vector.extract_strided_slice %76 {offsets = [0, 0], sizes = [8, 32], strides = [1, 1]} : vector<8x128xf32> to vector<8x32xf32>
    %78 = arith.mulf %73, %16 : vector<8x32xf32>
    %79 = arith.mulf %71, %75 : vector<8x32xf32>
    %80 = arith.addf %78, %79 : vector<8x32xf32>
    %81 = math.tanh %80 : vector<8x32xf32>
    %82 = arith.mulf %77, %81 : vector<8x32xf32>
    %83 = vector.extract_strided_slice %12 {offsets = [16, 0], sizes = [8, 128], strides = [1, 1]} : vector<64x128xf32> to vector<8x128xf32>
    %84 = arith.truncf %60 : vector<8x32xf32> to vector<8x32xbf16>
    %cst_31 = arith.constant dense<0.000000e+00> : vector<8x128xf32>
    %85 = tpu.matmul %84, %2, %cst_31 {dimension_numbers = #tpu.dot_dimension_numbers<[1], [0], [0], [1], [0, 0, 1, 1], [], []>} : vector<8x32xbf16>, vector<32x128xbf16>, vector<8x128xf32> -> vector<8x128xf32>
    %86 = arith.addf %83, %85 : vector<8x128xf32>
    %87 = arith.negf %86 : vector<8x128xf32>
    %88 = math.exp %87 : vector<8x128xf32>
    %cst_32 = arith.constant 1.000000e+00 : f32
    %89 = vector.broadcast %cst_32 : f32 to vector<8x128xf32>
    %90 = arith.addf %89, %88 : vector<8x128xf32>
    %91 = arith.divf %89, %90 : vector<8x128xf32>
    %92 = math.tanh %86 : vector<8x128xf32>
    %93 = vector.extract_strided_slice %91 {offsets = [0, 0], sizes = [8, 32], strides = [1, 1]} : vector<8x128xf32> to vector<8x32xf32>
    %c96_i32_33 = arith.constant 96 : i32
    %94 = tpu.dynamic_rotate %91 by %c96_i32_33 dim 1 : vector<8x128xf32>, i32 -> vector<8x128xf32>
    %95 = vector.extract_strided_slice %94 {offsets = [0, 0], sizes = [8, 32], strides = [1, 1]} : vector<8x128xf32> to vector<8x32xf32>
    %c64_i32_34 = arith.constant 64 : i32
    %96 = tpu.dynamic_rotate %92 by %c64_i32_34 dim 1 : vector<8x128xf32>, i32 -> vector<8x128xf32>
    %97 = vector.extract_strided_slice %96 {offsets = [0, 0], sizes = [8, 32], strides = [1, 1]} : vector<8x128xf32> to vector<8x32xf32>
    %c32_i32_35 = arith.constant 32 : i32
    %98 = tpu.dynamic_rotate %91 by %c32_i32_35 dim 1 : vector<8x128xf32>, i32 -> vector<8x128xf32>
    %99 = vector.extract_strided_slice %98 {offsets = [0, 0], sizes = [8, 32], strides = [1, 1]} : vector<8x128xf32> to vector<8x32xf32>
    %100 = arith.mulf %95, %58 : vector<8x32xf32>
    %101 = arith.mulf %93, %97 : vector<8x32xf32>
    %102 = arith.addf %100, %101 : vector<8x32xf32>
    %103 = math.tanh %102 : vector<8x32xf32>
    %104 = arith.mulf %99, %103 : vector<8x32xf32>
    %105 = tpu.concatenate %60, %82 in 1 : vector<8x32xf32>, vector<8x32xf32> -> vector<8x64xf32>
    %106 = arith.truncf %105 : vector<8x64xf32> to vector<8x64xbf16>
    %cst_36 = arith.constant dense<0.000000e+00> : vector<8x128xf32>
    %107 = tpu.matmul %106, %4, %cst_36 {dimension_numbers = #tpu.dot_dimension_numbers<[1], [0], [0], [1], [0, 0, 1, 1], [], []>} : vector<8x64xbf16>, vector<64x128xbf16>, vector<8x128xf32> -> vector<8x128xf32>
    %108 = arith.addf %107, %7 : vector<8x128xf32>
    %109 = arith.negf %108 : vector<8x128xf32>
    %110 = math.exp %109 : vector<8x128xf32>
    %cst_37 = arith.constant 1.000000e+00 : f32
    %111 = vector.broadcast %cst_37 : f32 to vector<8x128xf32>
    %112 = arith.addf %111, %110 : vector<8x128xf32>
    %113 = arith.divf %111, %112 : vector<8x128xf32>
    %114 = math.tanh %108 : vector<8x128xf32>
    %115 = vector.extract_strided_slice %113 {offsets = [0, 0], sizes = [8, 32], strides = [1, 1]} : vector<8x128xf32> to vector<8x32xf32>
    %c96_i32_38 = arith.constant 96 : i32
    %116 = tpu.dynamic_rotate %113 by %c96_i32_38 dim 1 : vector<8x128xf32>, i32 -> vector<8x128xf32>
    %117 = vector.extract_strided_slice %116 {offsets = [0, 0], sizes = [8, 32], strides = [1, 1]} : vector<8x128xf32> to vector<8x32xf32>
    %c64_i32_39 = arith.constant 64 : i32
    %118 = tpu.dynamic_rotate %114 by %c64_i32_39 dim 1 : vector<8x128xf32>, i32 -> vector<8x128xf32>
    %119 = vector.extract_strided_slice %118 {offsets = [0, 0], sizes = [8, 32], strides = [1, 1]} : vector<8x128xf32> to vector<8x32xf32>
    %c32_i32_40 = arith.constant 32 : i32
    %120 = tpu.dynamic_rotate %113 by %c32_i32_40 dim 1 : vector<8x128xf32>, i32 -> vector<8x128xf32>
    %121 = vector.extract_strided_slice %120 {offsets = [0, 0], sizes = [8, 32], strides = [1, 1]} : vector<8x128xf32> to vector<8x32xf32>
    %122 = arith.mulf %117, %80 : vector<8x32xf32>
    %123 = arith.mulf %115, %119 : vector<8x32xf32>
    %124 = arith.addf %122, %123 : vector<8x32xf32>
    %125 = math.tanh %124 : vector<8x32xf32>
    %126 = arith.mulf %121, %125 : vector<8x32xf32>
    %127 = vector.extract_strided_slice %12 {offsets = [24, 0], sizes = [8, 128], strides = [1, 1]} : vector<64x128xf32> to vector<8x128xf32>
    %128 = arith.truncf %104 : vector<8x32xf32> to vector<8x32xbf16>
    %cst_41 = arith.constant dense<0.000000e+00> : vector<8x128xf32>
    %129 = tpu.matmul %128, %2, %cst_41 {dimension_numbers = #tpu.dot_dimension_numbers<[1], [0], [0], [1], [0, 0, 1, 1], [], []>} : vector<8x32xbf16>, vector<32x128xbf16>, vector<8x128xf32> -> vector<8x128xf32>
    %130 = arith.addf %127, %129 : vector<8x128xf32>
    %131 = arith.negf %130 : vector<8x128xf32>
    %132 = math.exp %131 : vector<8x128xf32>
    %cst_42 = arith.constant 1.000000e+00 : f32
    %133 = vector.broadcast %cst_42 : f32 to vector<8x128xf32>
    %134 = arith.addf %133, %132 : vector<8x128xf32>
    %135 = arith.divf %133, %134 : vector<8x128xf32>
    %136 = math.tanh %130 : vector<8x128xf32>
    %137 = vector.extract_strided_slice %135 {offsets = [0, 0], sizes = [8, 32], strides = [1, 1]} : vector<8x128xf32> to vector<8x32xf32>
    %c96_i32_43 = arith.constant 96 : i32
    %138 = tpu.dynamic_rotate %135 by %c96_i32_43 dim 1 : vector<8x128xf32>, i32 -> vector<8x128xf32>
    %139 = vector.extract_strided_slice %138 {offsets = [0, 0], sizes = [8, 32], strides = [1, 1]} : vector<8x128xf32> to vector<8x32xf32>
    %c64_i32_44 = arith.constant 64 : i32
    %140 = tpu.dynamic_rotate %136 by %c64_i32_44 dim 1 : vector<8x128xf32>, i32 -> vector<8x128xf32>
    %141 = vector.extract_strided_slice %140 {offsets = [0, 0], sizes = [8, 32], strides = [1, 1]} : vector<8x128xf32> to vector<8x32xf32>
    %c32_i32_45 = arith.constant 32 : i32
    %142 = tpu.dynamic_rotate %135 by %c32_i32_45 dim 1 : vector<8x128xf32>, i32 -> vector<8x128xf32>
    %143 = vector.extract_strided_slice %142 {offsets = [0, 0], sizes = [8, 32], strides = [1, 1]} : vector<8x128xf32> to vector<8x32xf32>
    %144 = arith.mulf %139, %102 : vector<8x32xf32>
    %145 = arith.mulf %137, %141 : vector<8x32xf32>
    %146 = arith.addf %144, %145 : vector<8x32xf32>
    %147 = math.tanh %146 : vector<8x32xf32>
    %148 = arith.mulf %143, %147 : vector<8x32xf32>
    %149 = tpu.concatenate %104, %126 in 1 : vector<8x32xf32>, vector<8x32xf32> -> vector<8x64xf32>
    %150 = arith.truncf %149 : vector<8x64xf32> to vector<8x64xbf16>
    %cst_46 = arith.constant dense<0.000000e+00> : vector<8x128xf32>
    %151 = tpu.matmul %150, %4, %cst_46 {dimension_numbers = #tpu.dot_dimension_numbers<[1], [0], [0], [1], [0, 0, 1, 1], [], []>} : vector<8x64xbf16>, vector<64x128xbf16>, vector<8x128xf32> -> vector<8x128xf32>
    %152 = arith.addf %151, %7 : vector<8x128xf32>
    %153 = arith.negf %152 : vector<8x128xf32>
    %154 = math.exp %153 : vector<8x128xf32>
    %cst_47 = arith.constant 1.000000e+00 : f32
    %155 = vector.broadcast %cst_47 : f32 to vector<8x128xf32>
    %156 = arith.addf %155, %154 : vector<8x128xf32>
    %157 = arith.divf %155, %156 : vector<8x128xf32>
    %158 = math.tanh %152 : vector<8x128xf32>
    %159 = vector.extract_strided_slice %157 {offsets = [0, 0], sizes = [8, 32], strides = [1, 1]} : vector<8x128xf32> to vector<8x32xf32>
    %c96_i32_48 = arith.constant 96 : i32
    %160 = tpu.dynamic_rotate %157 by %c96_i32_48 dim 1 : vector<8x128xf32>, i32 -> vector<8x128xf32>
    %161 = vector.extract_strided_slice %160 {offsets = [0, 0], sizes = [8, 32], strides = [1, 1]} : vector<8x128xf32> to vector<8x32xf32>
    %c64_i32_49 = arith.constant 64 : i32
    %162 = tpu.dynamic_rotate %158 by %c64_i32_49 dim 1 : vector<8x128xf32>, i32 -> vector<8x128xf32>
    %163 = vector.extract_strided_slice %162 {offsets = [0, 0], sizes = [8, 32], strides = [1, 1]} : vector<8x128xf32> to vector<8x32xf32>
    %c32_i32_50 = arith.constant 32 : i32
    %164 = tpu.dynamic_rotate %157 by %c32_i32_50 dim 1 : vector<8x128xf32>, i32 -> vector<8x128xf32>
    %165 = vector.extract_strided_slice %164 {offsets = [0, 0], sizes = [8, 32], strides = [1, 1]} : vector<8x128xf32> to vector<8x32xf32>
    %166 = arith.mulf %161, %124 : vector<8x32xf32>
    %167 = arith.mulf %159, %163 : vector<8x32xf32>
    %168 = arith.addf %166, %167 : vector<8x32xf32>
    %169 = math.tanh %168 : vector<8x32xf32>
    %170 = arith.mulf %165, %169 : vector<8x32xf32>
    %171 = vector.extract_strided_slice %12 {offsets = [32, 0], sizes = [8, 128], strides = [1, 1]} : vector<64x128xf32> to vector<8x128xf32>
    %172 = arith.truncf %148 : vector<8x32xf32> to vector<8x32xbf16>
    %cst_51 = arith.constant dense<0.000000e+00> : vector<8x128xf32>
    %173 = tpu.matmul %172, %2, %cst_51 {dimension_numbers = #tpu.dot_dimension_numbers<[1], [0], [0], [1], [0, 0, 1, 1], [], []>} : vector<8x32xbf16>, vector<32x128xbf16>, vector<8x128xf32> -> vector<8x128xf32>
    %174 = arith.addf %171, %173 : vector<8x128xf32>
    %175 = arith.negf %174 : vector<8x128xf32>
    %176 = math.exp %175 : vector<8x128xf32>
    %cst_52 = arith.constant 1.000000e+00 : f32
    %177 = vector.broadcast %cst_52 : f32 to vector<8x128xf32>
    %178 = arith.addf %177, %176 : vector<8x128xf32>
    %179 = arith.divf %177, %178 : vector<8x128xf32>
    %180 = math.tanh %174 : vector<8x128xf32>
    %181 = vector.extract_strided_slice %179 {offsets = [0, 0], sizes = [8, 32], strides = [1, 1]} : vector<8x128xf32> to vector<8x32xf32>
    %c96_i32_53 = arith.constant 96 : i32
    %182 = tpu.dynamic_rotate %179 by %c96_i32_53 dim 1 : vector<8x128xf32>, i32 -> vector<8x128xf32>
    %183 = vector.extract_strided_slice %182 {offsets = [0, 0], sizes = [8, 32], strides = [1, 1]} : vector<8x128xf32> to vector<8x32xf32>
    %c64_i32_54 = arith.constant 64 : i32
    %184 = tpu.dynamic_rotate %180 by %c64_i32_54 dim 1 : vector<8x128xf32>, i32 -> vector<8x128xf32>
    %185 = vector.extract_strided_slice %184 {offsets = [0, 0], sizes = [8, 32], strides = [1, 1]} : vector<8x128xf32> to vector<8x32xf32>
    %c32_i32_55 = arith.constant 32 : i32
    %186 = tpu.dynamic_rotate %179 by %c32_i32_55 dim 1 : vector<8x128xf32>, i32 -> vector<8x128xf32>
    %187 = vector.extract_strided_slice %186 {offsets = [0, 0], sizes = [8, 32], strides = [1, 1]} : vector<8x128xf32> to vector<8x32xf32>
    %188 = arith.mulf %183, %146 : vector<8x32xf32>
    %189 = arith.mulf %181, %185 : vector<8x32xf32>
    %190 = arith.addf %188, %189 : vector<8x32xf32>
    %191 = math.tanh %190 : vector<8x32xf32>
    %192 = arith.mulf %187, %191 : vector<8x32xf32>
    %193 = tpu.concatenate %148, %170 in 1 : vector<8x32xf32>, vector<8x32xf32> -> vector<8x64xf32>
    %194 = arith.truncf %193 : vector<8x64xf32> to vector<8x64xbf16>
    %cst_56 = arith.constant dense<0.000000e+00> : vector<8x128xf32>
    %195 = tpu.matmul %194, %4, %cst_56 {dimension_numbers = #tpu.dot_dimension_numbers<[1], [0], [0], [1], [0, 0, 1, 1], [], []>} : vector<8x64xbf16>, vector<64x128xbf16>, vector<8x128xf32> -> vector<8x128xf32>
    %196 = arith.addf %195, %7 : vector<8x128xf32>
    %197 = arith.negf %196 : vector<8x128xf32>
    %198 = math.exp %197 : vector<8x128xf32>
    %cst_57 = arith.constant 1.000000e+00 : f32
    %199 = vector.broadcast %cst_57 : f32 to vector<8x128xf32>
    %200 = arith.addf %199, %198 : vector<8x128xf32>
    %201 = arith.divf %199, %200 : vector<8x128xf32>
    %202 = math.tanh %196 : vector<8x128xf32>
    %203 = vector.extract_strided_slice %201 {offsets = [0, 0], sizes = [8, 32], strides = [1, 1]} : vector<8x128xf32> to vector<8x32xf32>
    %c96_i32_58 = arith.constant 96 : i32
    %204 = tpu.dynamic_rotate %201 by %c96_i32_58 dim 1 : vector<8x128xf32>, i32 -> vector<8x128xf32>
    %205 = vector.extract_strided_slice %204 {offsets = [0, 0], sizes = [8, 32], strides = [1, 1]} : vector<8x128xf32> to vector<8x32xf32>
    %c64_i32_59 = arith.constant 64 : i32
    %206 = tpu.dynamic_rotate %202 by %c64_i32_59 dim 1 : vector<8x128xf32>, i32 -> vector<8x128xf32>
    %207 = vector.extract_strided_slice %206 {offsets = [0, 0], sizes = [8, 32], strides = [1, 1]} : vector<8x128xf32> to vector<8x32xf32>
    %c32_i32_60 = arith.constant 32 : i32
    %208 = tpu.dynamic_rotate %201 by %c32_i32_60 dim 1 : vector<8x128xf32>, i32 -> vector<8x128xf32>
    %209 = vector.extract_strided_slice %208 {offsets = [0, 0], sizes = [8, 32], strides = [1, 1]} : vector<8x128xf32> to vector<8x32xf32>
    %210 = arith.mulf %205, %168 : vector<8x32xf32>
    %211 = arith.mulf %203, %207 : vector<8x32xf32>
    %212 = arith.addf %210, %211 : vector<8x32xf32>
    %213 = math.tanh %212 : vector<8x32xf32>
    %214 = arith.mulf %209, %213 : vector<8x32xf32>
    %215 = vector.extract_strided_slice %12 {offsets = [40, 0], sizes = [8, 128], strides = [1, 1]} : vector<64x128xf32> to vector<8x128xf32>
    %216 = arith.truncf %192 : vector<8x32xf32> to vector<8x32xbf16>
    %cst_61 = arith.constant dense<0.000000e+00> : vector<8x128xf32>
    %217 = tpu.matmul %216, %2, %cst_61 {dimension_numbers = #tpu.dot_dimension_numbers<[1], [0], [0], [1], [0, 0, 1, 1], [], []>} : vector<8x32xbf16>, vector<32x128xbf16>, vector<8x128xf32> -> vector<8x128xf32>
    %218 = arith.addf %215, %217 : vector<8x128xf32>
    %219 = arith.negf %218 : vector<8x128xf32>
    %220 = math.exp %219 : vector<8x128xf32>
    %cst_62 = arith.constant 1.000000e+00 : f32
    %221 = vector.broadcast %cst_62 : f32 to vector<8x128xf32>
    %222 = arith.addf %221, %220 : vector<8x128xf32>
    %223 = arith.divf %221, %222 : vector<8x128xf32>
    %224 = math.tanh %218 : vector<8x128xf32>
    %225 = vector.extract_strided_slice %223 {offsets = [0, 0], sizes = [8, 32], strides = [1, 1]} : vector<8x128xf32> to vector<8x32xf32>
    %c96_i32_63 = arith.constant 96 : i32
    %226 = tpu.dynamic_rotate %223 by %c96_i32_63 dim 1 : vector<8x128xf32>, i32 -> vector<8x128xf32>
    %227 = vector.extract_strided_slice %226 {offsets = [0, 0], sizes = [8, 32], strides = [1, 1]} : vector<8x128xf32> to vector<8x32xf32>
    %c64_i32_64 = arith.constant 64 : i32
    %228 = tpu.dynamic_rotate %224 by %c64_i32_64 dim 1 : vector<8x128xf32>, i32 -> vector<8x128xf32>
    %229 = vector.extract_strided_slice %228 {offsets = [0, 0], sizes = [8, 32], strides = [1, 1]} : vector<8x128xf32> to vector<8x32xf32>
    %c32_i32_65 = arith.constant 32 : i32
    %230 = tpu.dynamic_rotate %223 by %c32_i32_65 dim 1 : vector<8x128xf32>, i32 -> vector<8x128xf32>
    %231 = vector.extract_strided_slice %230 {offsets = [0, 0], sizes = [8, 32], strides = [1, 1]} : vector<8x128xf32> to vector<8x32xf32>
    %232 = arith.mulf %227, %190 : vector<8x32xf32>
    %233 = arith.mulf %225, %229 : vector<8x32xf32>
    %234 = arith.addf %232, %233 : vector<8x32xf32>
    %235 = math.tanh %234 : vector<8x32xf32>
    %236 = arith.mulf %231, %235 : vector<8x32xf32>
    %237 = tpu.concatenate %192, %214 in 1 : vector<8x32xf32>, vector<8x32xf32> -> vector<8x64xf32>
    %238 = arith.truncf %237 : vector<8x64xf32> to vector<8x64xbf16>
    %cst_66 = arith.constant dense<0.000000e+00> : vector<8x128xf32>
    %239 = tpu.matmul %238, %4, %cst_66 {dimension_numbers = #tpu.dot_dimension_numbers<[1], [0], [0], [1], [0, 0, 1, 1], [], []>} : vector<8x64xbf16>, vector<64x128xbf16>, vector<8x128xf32> -> vector<8x128xf32>
    %240 = arith.addf %239, %7 : vector<8x128xf32>
    %241 = arith.negf %240 : vector<8x128xf32>
    %242 = math.exp %241 : vector<8x128xf32>
    %cst_67 = arith.constant 1.000000e+00 : f32
    %243 = vector.broadcast %cst_67 : f32 to vector<8x128xf32>
    %244 = arith.addf %243, %242 : vector<8x128xf32>
    %245 = arith.divf %243, %244 : vector<8x128xf32>
    %246 = math.tanh %240 : vector<8x128xf32>
    %247 = vector.extract_strided_slice %245 {offsets = [0, 0], sizes = [8, 32], strides = [1, 1]} : vector<8x128xf32> to vector<8x32xf32>
    %c96_i32_68 = arith.constant 96 : i32
    %248 = tpu.dynamic_rotate %245 by %c96_i32_68 dim 1 : vector<8x128xf32>, i32 -> vector<8x128xf32>
    %249 = vector.extract_strided_slice %248 {offsets = [0, 0], sizes = [8, 32], strides = [1, 1]} : vector<8x128xf32> to vector<8x32xf32>
    %c64_i32_69 = arith.constant 64 : i32
    %250 = tpu.dynamic_rotate %246 by %c64_i32_69 dim 1 : vector<8x128xf32>, i32 -> vector<8x128xf32>
    %251 = vector.extract_strided_slice %250 {offsets = [0, 0], sizes = [8, 32], strides = [1, 1]} : vector<8x128xf32> to vector<8x32xf32>
    %c32_i32_70 = arith.constant 32 : i32
    %252 = tpu.dynamic_rotate %245 by %c32_i32_70 dim 1 : vector<8x128xf32>, i32 -> vector<8x128xf32>
    %253 = vector.extract_strided_slice %252 {offsets = [0, 0], sizes = [8, 32], strides = [1, 1]} : vector<8x128xf32> to vector<8x32xf32>
    %254 = arith.mulf %249, %212 : vector<8x32xf32>
    %255 = arith.mulf %247, %251 : vector<8x32xf32>
    %256 = arith.addf %254, %255 : vector<8x32xf32>
    %257 = math.tanh %256 : vector<8x32xf32>
    %258 = arith.mulf %253, %257 : vector<8x32xf32>
    %259 = vector.extract_strided_slice %12 {offsets = [48, 0], sizes = [8, 128], strides = [1, 1]} : vector<64x128xf32> to vector<8x128xf32>
    %260 = arith.truncf %236 : vector<8x32xf32> to vector<8x32xbf16>
    %cst_71 = arith.constant dense<0.000000e+00> : vector<8x128xf32>
    %261 = tpu.matmul %260, %2, %cst_71 {dimension_numbers = #tpu.dot_dimension_numbers<[1], [0], [0], [1], [0, 0, 1, 1], [], []>} : vector<8x32xbf16>, vector<32x128xbf16>, vector<8x128xf32> -> vector<8x128xf32>
    %262 = arith.addf %259, %261 : vector<8x128xf32>
    %263 = arith.negf %262 : vector<8x128xf32>
    %264 = math.exp %263 : vector<8x128xf32>
    %cst_72 = arith.constant 1.000000e+00 : f32
    %265 = vector.broadcast %cst_72 : f32 to vector<8x128xf32>
    %266 = arith.addf %265, %264 : vector<8x128xf32>
    %267 = arith.divf %265, %266 : vector<8x128xf32>
    %268 = math.tanh %262 : vector<8x128xf32>
    %269 = vector.extract_strided_slice %267 {offsets = [0, 0], sizes = [8, 32], strides = [1, 1]} : vector<8x128xf32> to vector<8x32xf32>
    %c96_i32_73 = arith.constant 96 : i32
    %270 = tpu.dynamic_rotate %267 by %c96_i32_73 dim 1 : vector<8x128xf32>, i32 -> vector<8x128xf32>
    %271 = vector.extract_strided_slice %270 {offsets = [0, 0], sizes = [8, 32], strides = [1, 1]} : vector<8x128xf32> to vector<8x32xf32>
    %c64_i32_74 = arith.constant 64 : i32
    %272 = tpu.dynamic_rotate %268 by %c64_i32_74 dim 1 : vector<8x128xf32>, i32 -> vector<8x128xf32>
    %273 = vector.extract_strided_slice %272 {offsets = [0, 0], sizes = [8, 32], strides = [1, 1]} : vector<8x128xf32> to vector<8x32xf32>
    %c32_i32_75 = arith.constant 32 : i32
    %274 = tpu.dynamic_rotate %267 by %c32_i32_75 dim 1 : vector<8x128xf32>, i32 -> vector<8x128xf32>
    %275 = vector.extract_strided_slice %274 {offsets = [0, 0], sizes = [8, 32], strides = [1, 1]} : vector<8x128xf32> to vector<8x32xf32>
    %276 = arith.mulf %271, %234 : vector<8x32xf32>
    %277 = arith.mulf %269, %273 : vector<8x32xf32>
    %278 = arith.addf %276, %277 : vector<8x32xf32>
    %279 = math.tanh %278 : vector<8x32xf32>
    %280 = arith.mulf %275, %279 : vector<8x32xf32>
    %281 = tpu.concatenate %236, %258 in 1 : vector<8x32xf32>, vector<8x32xf32> -> vector<8x64xf32>
    %282 = arith.truncf %281 : vector<8x64xf32> to vector<8x64xbf16>
    %cst_76 = arith.constant dense<0.000000e+00> : vector<8x128xf32>
    %283 = tpu.matmul %282, %4, %cst_76 {dimension_numbers = #tpu.dot_dimension_numbers<[1], [0], [0], [1], [0, 0, 1, 1], [], []>} : vector<8x64xbf16>, vector<64x128xbf16>, vector<8x128xf32> -> vector<8x128xf32>
    %284 = arith.addf %283, %7 : vector<8x128xf32>
    %285 = arith.negf %284 : vector<8x128xf32>
    %286 = math.exp %285 : vector<8x128xf32>
    %cst_77 = arith.constant 1.000000e+00 : f32
    %287 = vector.broadcast %cst_77 : f32 to vector<8x128xf32>
    %288 = arith.addf %287, %286 : vector<8x128xf32>
    %289 = arith.divf %287, %288 : vector<8x128xf32>
    %290 = math.tanh %284 : vector<8x128xf32>
    %291 = vector.extract_strided_slice %289 {offsets = [0, 0], sizes = [8, 32], strides = [1, 1]} : vector<8x128xf32> to vector<8x32xf32>
    %c96_i32_78 = arith.constant 96 : i32
    %292 = tpu.dynamic_rotate %289 by %c96_i32_78 dim 1 : vector<8x128xf32>, i32 -> vector<8x128xf32>
    %293 = vector.extract_strided_slice %292 {offsets = [0, 0], sizes = [8, 32], strides = [1, 1]} : vector<8x128xf32> to vector<8x32xf32>
    %c64_i32_79 = arith.constant 64 : i32
    %294 = tpu.dynamic_rotate %290 by %c64_i32_79 dim 1 : vector<8x128xf32>, i32 -> vector<8x128xf32>
    %295 = vector.extract_strided_slice %294 {offsets = [0, 0], sizes = [8, 32], strides = [1, 1]} : vector<8x128xf32> to vector<8x32xf32>
    %c32_i32_80 = arith.constant 32 : i32
    %296 = tpu.dynamic_rotate %289 by %c32_i32_80 dim 1 : vector<8x128xf32>, i32 -> vector<8x128xf32>
    %297 = vector.extract_strided_slice %296 {offsets = [0, 0], sizes = [8, 32], strides = [1, 1]} : vector<8x128xf32> to vector<8x32xf32>
    %298 = arith.mulf %293, %256 : vector<8x32xf32>
    %299 = arith.mulf %291, %295 : vector<8x32xf32>
    %300 = arith.addf %298, %299 : vector<8x32xf32>
    %301 = math.tanh %300 : vector<8x32xf32>
    %302 = arith.mulf %297, %301 : vector<8x32xf32>
    %303 = vector.extract_strided_slice %12 {offsets = [56, 0], sizes = [8, 128], strides = [1, 1]} : vector<64x128xf32> to vector<8x128xf32>
    %304 = arith.truncf %280 : vector<8x32xf32> to vector<8x32xbf16>
    %cst_81 = arith.constant dense<0.000000e+00> : vector<8x128xf32>
    %305 = tpu.matmul %304, %2, %cst_81 {dimension_numbers = #tpu.dot_dimension_numbers<[1], [0], [0], [1], [0, 0, 1, 1], [], []>} : vector<8x32xbf16>, vector<32x128xbf16>, vector<8x128xf32> -> vector<8x128xf32>
    %306 = arith.addf %303, %305 : vector<8x128xf32>
    %307 = arith.negf %306 : vector<8x128xf32>
    %308 = math.exp %307 : vector<8x128xf32>
    %cst_82 = arith.constant 1.000000e+00 : f32
    %309 = vector.broadcast %cst_82 : f32 to vector<8x128xf32>
    %310 = arith.addf %309, %308 : vector<8x128xf32>
    %311 = arith.divf %309, %310 : vector<8x128xf32>
    %312 = math.tanh %306 : vector<8x128xf32>
    %313 = vector.extract_strided_slice %311 {offsets = [0, 0], sizes = [8, 32], strides = [1, 1]} : vector<8x128xf32> to vector<8x32xf32>
    %c96_i32_83 = arith.constant 96 : i32
    %314 = tpu.dynamic_rotate %311 by %c96_i32_83 dim 1 : vector<8x128xf32>, i32 -> vector<8x128xf32>
    %315 = vector.extract_strided_slice %314 {offsets = [0, 0], sizes = [8, 32], strides = [1, 1]} : vector<8x128xf32> to vector<8x32xf32>
    %c64_i32_84 = arith.constant 64 : i32
    %316 = tpu.dynamic_rotate %312 by %c64_i32_84 dim 1 : vector<8x128xf32>, i32 -> vector<8x128xf32>
    %317 = vector.extract_strided_slice %316 {offsets = [0, 0], sizes = [8, 32], strides = [1, 1]} : vector<8x128xf32> to vector<8x32xf32>
    %c32_i32_85 = arith.constant 32 : i32
    %318 = tpu.dynamic_rotate %311 by %c32_i32_85 dim 1 : vector<8x128xf32>, i32 -> vector<8x128xf32>
    %319 = vector.extract_strided_slice %318 {offsets = [0, 0], sizes = [8, 32], strides = [1, 1]} : vector<8x128xf32> to vector<8x32xf32>
    %320 = arith.mulf %315, %278 : vector<8x32xf32>
    %321 = arith.mulf %313, %317 : vector<8x32xf32>
    %322 = arith.addf %320, %321 : vector<8x32xf32>
    %323 = math.tanh %322 : vector<8x32xf32>
    %324 = arith.mulf %319, %323 : vector<8x32xf32>
    %325 = tpu.concatenate %280, %302 in 1 : vector<8x32xf32>, vector<8x32xf32> -> vector<8x64xf32>
    %326 = arith.truncf %325 : vector<8x64xf32> to vector<8x64xbf16>
    %cst_86 = arith.constant dense<0.000000e+00> : vector<8x128xf32>
    %327 = tpu.matmul %326, %4, %cst_86 {dimension_numbers = #tpu.dot_dimension_numbers<[1], [0], [0], [1], [0, 0, 1, 1], [], []>} : vector<8x64xbf16>, vector<64x128xbf16>, vector<8x128xf32> -> vector<8x128xf32>
    %328 = arith.addf %327, %7 : vector<8x128xf32>
    %329 = arith.negf %328 : vector<8x128xf32>
    %330 = math.exp %329 : vector<8x128xf32>
    %cst_87 = arith.constant 1.000000e+00 : f32
    %331 = vector.broadcast %cst_87 : f32 to vector<8x128xf32>
    %332 = arith.addf %331, %330 : vector<8x128xf32>
    %333 = arith.divf %331, %332 : vector<8x128xf32>
    %334 = math.tanh %328 : vector<8x128xf32>
    %335 = vector.extract_strided_slice %333 {offsets = [0, 0], sizes = [8, 32], strides = [1, 1]} : vector<8x128xf32> to vector<8x32xf32>
    %c96_i32_88 = arith.constant 96 : i32
    %336 = tpu.dynamic_rotate %333 by %c96_i32_88 dim 1 : vector<8x128xf32>, i32 -> vector<8x128xf32>
    %337 = vector.extract_strided_slice %336 {offsets = [0, 0], sizes = [8, 32], strides = [1, 1]} : vector<8x128xf32> to vector<8x32xf32>
    %c64_i32_89 = arith.constant 64 : i32
    %338 = tpu.dynamic_rotate %334 by %c64_i32_89 dim 1 : vector<8x128xf32>, i32 -> vector<8x128xf32>
    %339 = vector.extract_strided_slice %338 {offsets = [0, 0], sizes = [8, 32], strides = [1, 1]} : vector<8x128xf32> to vector<8x32xf32>
    %c32_i32_90 = arith.constant 32 : i32
    %340 = tpu.dynamic_rotate %333 by %c32_i32_90 dim 1 : vector<8x128xf32>, i32 -> vector<8x128xf32>
    %341 = vector.extract_strided_slice %340 {offsets = [0, 0], sizes = [8, 32], strides = [1, 1]} : vector<8x128xf32> to vector<8x32xf32>
    %342 = arith.mulf %337, %300 : vector<8x32xf32>
    %343 = arith.mulf %335, %339 : vector<8x32xf32>
    %344 = arith.addf %342, %343 : vector<8x32xf32>
    %345 = math.tanh %344 : vector<8x32xf32>
    %346 = arith.mulf %341, %345 : vector<8x32xf32>
    %347 = tpu.concatenate %324, %346 in 1 : vector<8x32xf32>, vector<8x32xf32> -> vector<8x64xf32>
    %348 = arith.truncf %347 : vector<8x64xf32> to vector<8x64xbf16>
    %cst_91 = arith.constant dense<0.000000e+00> : vector<8x128xf32>
    %349 = tpu.matmul %348, %4, %cst_91 {dimension_numbers = #tpu.dot_dimension_numbers<[1], [0], [0], [1], [0, 0, 1, 1], [], []>} : vector<8x64xbf16>, vector<64x128xbf16>, vector<8x128xf32> -> vector<8x128xf32>
    %350 = arith.addf %349, %7 : vector<8x128xf32>
    %351 = arith.negf %350 : vector<8x128xf32>
    %352 = math.exp %351 : vector<8x128xf32>
    %cst_92 = arith.constant 1.000000e+00 : f32
    %353 = vector.broadcast %cst_92 : f32 to vector<8x128xf32>
    %354 = arith.addf %353, %352 : vector<8x128xf32>
    %355 = arith.divf %353, %354 : vector<8x128xf32>
    %356 = math.tanh %350 : vector<8x128xf32>
    %357 = vector.extract_strided_slice %355 {offsets = [0, 0], sizes = [8, 32], strides = [1, 1]} : vector<8x128xf32> to vector<8x32xf32>
    %c96_i32_93 = arith.constant 96 : i32
    %358 = tpu.dynamic_rotate %355 by %c96_i32_93 dim 1 : vector<8x128xf32>, i32 -> vector<8x128xf32>
    %359 = vector.extract_strided_slice %358 {offsets = [0, 0], sizes = [8, 32], strides = [1, 1]} : vector<8x128xf32> to vector<8x32xf32>
    %c64_i32_94 = arith.constant 64 : i32
    %360 = tpu.dynamic_rotate %356 by %c64_i32_94 dim 1 : vector<8x128xf32>, i32 -> vector<8x128xf32>
    %361 = vector.extract_strided_slice %360 {offsets = [0, 0], sizes = [8, 32], strides = [1, 1]} : vector<8x128xf32> to vector<8x32xf32>
    %c32_i32_95 = arith.constant 32 : i32
    %362 = tpu.dynamic_rotate %355 by %c32_i32_95 dim 1 : vector<8x128xf32>, i32 -> vector<8x128xf32>
    %363 = vector.extract_strided_slice %362 {offsets = [0, 0], sizes = [8, 32], strides = [1, 1]} : vector<8x128xf32> to vector<8x32xf32>
    %364 = arith.mulf %359, %344 : vector<8x32xf32>
    %365 = arith.mulf %357, %361 : vector<8x32xf32>
    %366 = arith.addf %364, %365 : vector<8x32xf32>
    %367 = math.tanh %366 : vector<8x32xf32>
    %368 = arith.mulf %363, %367 : vector<8x32xf32>
    %369 = tpu.concatenate %324, %368 in 0 : vector<8x32xf32>, vector<8x32xf32> -> vector<16x32xf32>
    %370 = arith.truncf %369 : vector<16x32xf32> to vector<16x32xbf16>
    %cst_96 = arith.constant dense<0.000000e+00> : vector<16x128xf32>
    %371 = tpu.matmul %370, %8, %cst_96 {dimension_numbers = #tpu.dot_dimension_numbers<[1], [0], [0], [1], [0, 0, 1, 1], [], []>} : vector<16x32xbf16>, vector<32x128xbf16>, vector<16x128xf32> -> vector<16x128xf32>
    %372 = vector.broadcast %9 : vector<1x128xf32> to vector<16x128xf32>
    %373 = arith.addf %371, %372 : vector<16x128xf32>
    %c0_97 = arith.constant 0 : index
    %c0_98 = arith.constant 0 : index
    %374 = vector.load %arg8[%c0_97, %c0_98] : memref<16x128xf32, #tpu.memory_space<vmem>>, vector<16x128xf32>
    tpu.vector_store %arg8[%c0_97, %c0_98], %373 {strides = array<i32>} : memref<16x128xf32, #tpu.memory_space<vmem>>, vector<16x128xf32>,
    return
  }
}

</mosaic_0001>

<llo_original>
// kernel: lstm_predictor_forward.1
$region0: #{lstm_predictor_forward.1}
  #allocation0 [shape = 'u32[]', space=smem, size = 0x4, offset = 0x4, fixed_abs, tag = 'smem constant byte address 0x4 - core index']
  #allocation1 [shape = 'u32[144,128]{1,0:T(1,128)}', space=vmem, size = 0x12000, scoped, tag = 'internal scratch']
  %s0 = inlined_call_operand.vmem [shape: bf16[64,4], index: 0, kind: input, shape index: {}]
  %s1 = inlined_call_operand.vmem [shape: bf16[4,128], index: 1, kind: input, shape index: {}]
  %s2 = inlined_call_operand.vmem [shape: bf16[32,128], index: 2, kind: input, shape index: {}]
  %s3 = inlined_call_operand.vmem [shape: f32[1,128], index: 3, kind: input, shape index: {}]
  %s4 = inlined_call_operand.vmem [shape: bf16[64,128], index: 4, kind: input, shape index: {}]
  %s5 = inlined_call_operand.vmem [shape: f32[1,128], index: 5, kind: input, shape index: {}]
  %s6 = inlined_call_operand.vmem [shape: bf16[32,128], index: 6, kind: input, shape index: {}]
  %s7 = inlined_call_operand.vmem [shape: f32[1,128], index: 7, kind: input, shape index: {}]
  %s8 = inlined_call_operand.vmem [shape: f32[16,128], index: 8, kind: output, shape index: {}]
  %s9 = sld [smem:[#allocation0]]
  $region42: #{lstm_predictor_forward.1} parent=0
    _
  %s11 = ssub.s32 1, %s9
  %s12 = scalar_select 0, %s11, %s9
  // Predicated region
  $region2: #{lstm_predictor_forward.1} parent=0 // pred_check
    _
  $region3: #{lstm_predictor_forward.1} parent=0 // pred_check_branch
    %14 = sbr.rel (0) target = $region5
  $region4: #{lstm_predictor_forward.1} parent=0 // pred_region
    _
  $region5: #{lstm_predictor_forward.1} parent=0 // pred_fallthru
    _
  // Predicated region
  $region6: #{lstm_predictor_forward.1} parent=0 // pred_check
    _
  $region7: #{lstm_predictor_forward.1} parent=0 // pred_check_branch
    %16 = sbr.rel (0) target = $region9
  $region8: #{lstm_predictor_forward.1} parent=0 // pred_region
    _
  $region9: #{lstm_predictor_forward.1} parent=0 // pred_fallthru
    _
  // Predicated region
  $region10: #{lstm_predictor_forward.1} parent=0 // pred_check
    _
  $region11: #{lstm_predictor_forward.1} parent=0 // pred_check_branch
    %18 = sbr.rel (0) target = $region13
  $region12: #{lstm_predictor_forward.1} parent=0 // pred_region
    _
  $region13: #{lstm_predictor_forward.1} parent=0 // pred_fallthru
    _
  // Predicated region
  $region14: #{lstm_predictor_forward.1} parent=0 // pred_check
    _
  $region15: #{lstm_predictor_forward.1} parent=0 // pred_check_branch
    %20 = sbr.rel (0) target = $region17
  $region16: #{lstm_predictor_forward.1} parent=0 // pred_region
    _
  $region17: #{lstm_predictor_forward.1} parent=0 // pred_fallthru
    _
  // Predicated region
  $region18: #{lstm_predictor_forward.1} parent=0 // pred_check
    _
  $region19: #{lstm_predictor_forward.1} parent=0 // pred_check_branch
    %22 = sbr.rel (0) target = $region21
  $region20: #{lstm_predictor_forward.1} parent=0 // pred_region
    _
  $region21: #{lstm_predictor_forward.1} parent=0 // pred_fallthru
    _
  // Predicated region
  $region22: #{lstm_predictor_forward.1} parent=0 // pred_check
    _
  $region23: #{lstm_predictor_forward.1} parent=0 // pred_check_branch
    %24 = sbr.rel (0) target = $region25
  $region24: #{lstm_predictor_forward.1} parent=0 // pred_region
    _
  $region25: #{lstm_predictor_forward.1} parent=0 // pred_fallthru
    _
  // Predicated region
  $region26: #{lstm_predictor_forward.1} parent=0 // pred_check
    _
  $region27: #{lstm_predictor_forward.1} parent=0 // pred_check_branch
    %26 = sbr.rel (0) target = $region29
  $region28: #{lstm_predictor_forward.1} parent=0 // pred_region
    _
  $region29: #{lstm_predictor_forward.1} parent=0 // pred_fallthru
    _
  // Predicated region
  $region30: #{lstm_predictor_forward.1} parent=0 // pred_check
    _
  $region31: #{lstm_predictor_forward.1} parent=0 // pred_check_branch
    %28 = sbr.rel (0) target = $region33
  $region32: #{lstm_predictor_forward.1} parent=0 // pred_region
    _
  $region33: #{lstm_predictor_forward.1} parent=0 // pred_fallthru
    _
  %v30 = vld [vmem:[%s0] sm:$0xf]
  %v31 = vld [vmem:[%s0 + $0x4] sm:$0xf]
  %v32 = vld [vmem:[%s0 + $0x8] sm:$0xf]
  %v33 = vld [vmem:[%s0 + $0xc] sm:$0xf]
  %v34 = vld [vmem:[%s0 + $0x10] sm:$0xf]
  %v35 = vld [vmem:[%s0 + $0x14] sm:$0xf]
  %v36 = vld [vmem:[%s0 + $0x18] sm:$0xf]
  %v37 = vld [vmem:[%s0 + $0x1c] sm:$0xf]
  %v38 = vld [vmem:[%s1] sm:$0x3]
  %v39 = vld [vmem:[%s2] sm:$0xf]
  %v40 = vld [vmem:[%s2 + $0x4] sm:$0xf]
  %v41 = vld [vmem:[%s2 + $0x8] sm:$0xf]
  %v42 = vld [vmem:[%s2 + $0xc] sm:$0xf]
  %v43 = vld [vmem:[%s3] sm:$0x1]
  %v44 = vld [vmem:[%s4] sm:$0xf]
  %v45 = vld [vmem:[%s4 + $0x4] sm:$0xf]
  %v46 = vld [vmem:[%s4 + $0x8] sm:$0xf]
  %v47 = vld [vmem:[%s4 + $0xc] sm:$0xf]
  %v48 = vld [vmem:[%s4 + $0x10] sm:$0xf]
  %v49 = vld [vmem:[%s4 + $0x14] sm:$0xf]
  %v50 = vld [vmem:[%s4 + $0x18] sm:$0xf]
  %v51 = vld [vmem:[%s4 + $0x1c] sm:$0xf]
  %v52 = vld [vmem:[%s5] sm:$0x1]
  %v54 = vlaneseq
  %v55 = vshrl.u32 %v54, 7
  %v56 = vsub.s32 0, %v55
  %v57 = vrot.slane %v52, %v56
  %v59 = vld [vmem:[%s6] sm:$0xf]
  %v60 = vld [vmem:[%s6 + $0x4] sm:$0xf]
  %v61 = vld [vmem:[%s6 + $0x8] sm:$0xf]
  %v62 = vld [vmem:[%s6 + $0xc] sm:$0xf]
  %v63 = vld [vmem:[%s7] sm:$0x1]
  %v65 = vlaneseq
  %v66 = vshrl.u32 %v65, 7
  %v67 = vsub.s32 0, %v66
  %v68 = vrot.slane %v43, %v67
  %v78 = vunpack.c.l.b16 %v30
  %v79 = vunpack.c.l.b16 %v31
  %v80 = vunpack.c.l.b16 %v32
  %v81 = vunpack.c.l.b16 %v33
  %v82 = vunpack.c.l.b16 %v34
  %v83 = vunpack.c.l.b16 %v35
  %v84 = vunpack.c.l.b16 %v36
  %v85 = vunpack.c.l.b16 %v37
  %v86 = vpack.c.b16 %v79, %v78
  %v87 = vpack.c.b16 %v81, %v80
  %v88 = vpack.c.b16 %v83, %v82
  %v89 = vpack.c.b16 %v85, %v84
  %vm90 = vcmask 31744
  %v92 = vsel %vm90, %v86, 0
  %v95 = vsel %vm90, %v87, 0
  %v98 = vsel %vm90, %v88, 0
  %v101 = vsel %vm90, %v89, 0
  %vm103 = vcmask 1041408
  %v105 = vsel %vm103, %v38, 0
  %107 = vmatprep.subr.bf16.mxu0 0
  %108 = vmatpush1.bf16.msra.mxu0 %v105
  %109 = vmatprep.subr.bf16.mxu0 0
  %110 = vmatpush1.bf16.msra.mxu0 0
  %111 = vmatprep.subr.bf16.mxu0 0
  %112 = vmatpush1.bf16.msra.mxu0 0
  %113 = vmatprep.subr.bf16.mxu0 0
  %114 = vmatpush1.bf16.msra.mxu0 0
  %115 = vmatprep.subr.bf16.mxu0 0
  %116 = vmatpush1.bf16.msra.mxu0 0
  %117 = vmatprep.subr.bf16.mxu0 0
  %118 = vmatpush1.bf16.msra.mxu0 0
  %119 = vmatprep.subr.bf16.mxu0 0
  %120 = vmatpush1.bf16.msra.mxu0 0
  %121 = vmatprep.subr.bf16.mxu0 0
  %122 = vmatpush1.bf16.msra.mxu0 0
  %123 = vmatprep.subr.bf16.mxu0 0
  %124 = vmatpush1.bf16.msra.mxu0 0
  %125 = vmatprep.subr.bf16.mxu0 0
  %126 = vmatpush1.bf16.msra.mxu0 0
  %127 = vmatprep.subr.bf16.mxu0 0
  %128 = vmatpush1.bf16.msra.mxu0 0
  %129 = vmatprep.subr.bf16.mxu0 0
  %130 = vmatpush1.bf16.msra.mxu0 0
  %131 = vmatprep.subr.bf16.mxu0 0
  %132 = vmatpush1.bf16.msra.mxu0 0
  %133 = vmatprep.subr.bf16.mxu0 0
  %134 = vmatpush1.bf16.msra.mxu0 0
  %135 = vmatprep.subr.bf16.mxu0 0
  %136 = vmatpush1.bf16.msra.mxu0 0
  %137 = vmatprep.subr.bf16.mxu0 0
  %138 = vmatpush1.bf16.msra.mxu0 0
  %139 = vmatprep.mubr.bf16.mxu0 0
  %140 = vmatmul.mubr.bf16.gmra.mrb[0].mxu0 %v92
  %v141 = vpop.f32.mrb[0].mxu0
  %v142 = vadd.f32 %v68, %v141
  %v143 = vpop.f32.mrb[0].mxu0
  %v144 = vpop.f32.mrb[0].mxu0
  %v145 = vadd.f32 %v68, %v144
  %v146 = vpop.f32.mrb[0].mxu0
  %147 = vmatprep.mubr.bf16.mxu0 0
  %148 = vmatmul.mubr.bf16.gmra.mrb[0].mxu0 %v95
  %v149 = vpop.f32.mrb[0].mxu0
  %v150 = vadd.f32 %v68, %v149
  %v151 = vpop.f32.mrb[0].mxu0
  %v152 = vpop.f32.mrb[0].mxu0
  %v153 = vadd.f32 %v68, %v152
  %v154 = vpop.f32.mrb[0].mxu0
  %155 = vmatprep.mubr.bf16.mxu0 0
  %156 = vmatmul.mubr.bf16.gmra.mrb[0].mxu0 %v98
  %v157 = vpop.f32.mrb[0].mxu0
  %v158 = vadd.f32 %v68, %v157
  %v159 = vpop.f32.mrb[0].mxu0
  %v160 = vpop.f32.mrb[0].mxu0
  %v161 = vadd.f32 %v68, %v160
  %v162 = vpop.f32.mrb[0].mxu0
  %163 = vmatprep.mubr.bf16.mxu0 0
  %164 = vmatmul.mubr.bf16.gmra.mrb[0].mxu0 %v101
  %v165 = vpop.f32.mrb[0].mxu0
  %v166 = vadd.f32 %v68, %v165
  %v167 = vpop.f32.mrb[0].mxu0
  %v168 = vpop.f32.mrb[0].mxu0
  %v169 = vadd.f32 %v68, %v168
  %v170 = vpop.f32.mrb[0].mxu0
  %171 = vdwg.mxu0
  %v176 = vunpack.c.l.b16 %v39
  %v177 = vunpack.c.l.b16 %v40
  %v178 = vunpack.c.l.b16 %v41
  %v179 = vunpack.c.l.b16 %v42
  %v180 = vpack.c.b16 %v177, %v176
  %v181 = vpack.c.b16 %v179, %v178
  %vm184 = vcmask 261120
  %v186 = vsel %vm184, 0, 0
  %188 = vmatprep.subr.bf16.mxu0 0
  %189 = vmatpush1.bf16.msra.mxu0 %v180
  %190 = vmatprep.subr.bf16.mxu0 0
  %191 = vmatpush1.bf16.msra.mxu0 %v181
  %192 = vmatprep.subr.bf16.mxu0 0
  %193 = vmatpush1.bf16.msra.mxu0 0
  %194 = vmatprep.subr.bf16.mxu0 0
  %195 = vmatpush1.bf16.msra.mxu0 0
  %196 = vmatprep.subr.bf16.mxu0 0
  %197 = vmatpush1.bf16.msra.mxu0 0
  %198 = vmatprep.subr.bf16.mxu0 0
  %199 = vmatpush1.bf16.msra.mxu0 0
  %200 = vmatprep.subr.bf16.mxu0 0
  %201 = vmatpush1.bf16.msra.mxu0 0
  %202 = vmatprep.subr.bf16.mxu0 0
  %203 = vmatpush1.bf16.msra.mxu0 0
  %204 = vmatprep.subr.bf16.mxu0 0
  %205 = vmatpush1.bf16.msra.mxu0 0
  %206 = vmatprep.subr.bf16.mxu0 0
  %207 = vmatpush1.bf16.msra.mxu0 0
  %208 = vmatprep.subr.bf16.mxu0 0
  %209 = vmatpush1.bf16.msra.mxu0 0
  %210 = vmatprep.subr.bf16.mxu0 0
  %211 = vmatpush1.bf16.msra.mxu0 0
  %212 = vmatprep.subr.bf16.mxu0 0
  %213 = vmatpush1.bf16.msra.mxu0 0
  %214 = vmatprep.subr.bf16.mxu0 0
  %215 = vmatpush1.bf16.msra.mxu0 0
  %216 = vmatprep.subr.bf16.mxu0 0
  %217 = vmatpush1.bf16.msra.mxu0 0
  %218 = vmatprep.subr.bf16.mxu0 0
  %219 = vmatpush1.bf16.msra.mxu0 0
  %220 = vmatprep.mubr.bf16.mxu0 0
  %221 = vmatmul.mubr.bf16.gmra.mrb[0].mxu0 %v186
  %v222 = vpop.f32.mrb[0].mxu0
  %v223 = vadd.f32 0.0, %v222
  %v224 = vpop.f32.mrb[0].mxu0
  %v225 = vpop.f32.mrb[0].mxu0
  %v226 = vpop.f32.mrb[0].mxu0
  %227 = vdwg.mxu0
  %v228 = vadd.f32 %v142, %v223
  %v229 = vxor.u32 %v228, 2147483648
  %v230 = vmul.f32 %v229, 1.442695
  %v231 = vpow.pop %v230
  %v232 = vadd.f32 %v231, 1.0
  %v233 = vrcp.pop %v232
  %v234 = vmul.f32 1.0, %v233
  %v235 = vtanh.pop %v228
  %236 = vrot.lane.b32.xlu0 %v234, 96
  %v237 = vpop.permute.xlu0 %236
  %238 = vrot.lane.b32.xlu0 %v235, 64
  %v239 = vpop.permute.xlu0 %238
  %240 = vrot.lane.b32.xlu0 %v234, 32
  %v241 = vpop.permute.xlu0 %240
  %v242 = vmul.f32 %v237, 0.0
  %v243 = vmul.f32 %v234, %v239
  %v244 = vadd.f32 %v242, %v243
  %v245 = vtanh.pop %v244
  %v246 = vmul.f32 %v241, %v245
  %v247 = vpack.c.bf16 %v246, %v246
  %v249 = vsel %vm184, %v247, 0
  %251 = vmatprep.subr.bf16.mxu0 0
  %252 = vmatpush1.bf16.msra.mxu0 %v180
  %253 = vmatprep.subr.bf16.mxu0 0
  %254 = vmatpush1.bf16.msra.mxu0 %v181
  %255 = vmatprep.subr.bf16.mxu0 0
  %256 = vmatpush1.bf16.msra.mxu0 0
  %257 = vmatprep.subr.bf16.mxu0 0
  %258 = vmatpush1.bf16.msra.mxu0 0
  %259 = vmatprep.subr.bf16.mxu0 0
  %260 = vmatpush1.bf16.msra.mxu0 0
  %261 = vmatprep.subr.bf16.mxu0 0
  %262 = vmatpush1.bf16.msra.mxu0 0
  %263 = vmatprep.subr.bf16.mxu0 0
  %264 = vmatpush1.bf16.msra.mxu0 0
  %265 = vmatprep.subr.bf16.mxu0 0
  %266 = vmatpush1.bf16.msra.mxu0 0
  %267 = vmatprep.subr.bf16.mxu0 0
  %268 = vmatpush1.bf16.msra.mxu0 0
  %269 = vmatprep.subr.bf16.mxu0 0
  %270 = vmatpush1.bf16.msra.mxu0 0
  %271 = vmatprep.subr.bf16.mxu0 0
  %272 = vmatpush1.bf16.msra.mxu0 0
  %273 = vmatprep.subr.bf16.mxu0 0
  %274 = vmatpush1.bf16.msra.mxu0 0
  %275 = vmatprep.subr.bf16.mxu0 0
  %276 = vmatpush1.bf16.msra.mxu0 0
  %277 = vmatprep.subr.bf16.mxu0 0
  %278 = vmatpush1.bf16.msra.mxu0 0
  %279 = vmatprep.subr.bf16.mxu0 0
  %280 = vmatpush1.bf16.msra.mxu0 0
  %281 = vmatprep.subr.bf16.mxu0 0
  %282 = vmatpush1.bf16.msra.mxu0 0
  %283 = vmatprep.mubr.bf16.mxu0 0
  %284 = vmatmul.mubr.bf16.gmra.mrb[0].mxu0 %v249
  %v285 = vpop.f32.mrb[0].mxu0
  %v286 = vadd.f32 0.0, %v285
  %v287 = vpop.f32.mrb[0].mxu0
  %v288 = vpop.f32.mrb[0].mxu0
  %v289 = vpop.f32.mrb[0].mxu0
  %290 = vdwg.mxu0
  %v291 = vadd.f32 %v145, %v286
  %v292 = vxor.u32 %v291, 2147483648
  %v293 = vmul.f32 %v292, 1.442695
  %v294 = vpow.pop %v293
  %v295 = vadd.f32 %v294, 1.0
  %v296 = vrcp.pop %v295
  %v297 = vmul.f32 1.0, %v296
  %v298 = vtanh.pop %v291
  %299 = vrot.lane.b32.xlu0 %v297, 96
  %v300 = vpop.permute.xlu0 %299
  %301 = vrot.lane.b32.xlu0 %v298, 64
  %v302 = vpop.permute.xlu0 %301
  %303 = vrot.lane.b32.xlu0 %v297, 32
  %v304 = vpop.permute.xlu0 %303
  %v305 = vmul.f32 %v300, %v244
  %v306 = vmul.f32 %v297, %v302
  %v307 = vadd.f32 %v305, %v306
  %v308 = vtanh.pop %v307
  %v309 = vmul.f32 %v304, %v308
  %v310 = vsel %vm184, %v246, 0.0
  %v311 = vpack.c.bf16 %v310, %v310
  %v320 = vunpack.c.l.b16 %v44
  %v321 = vunpack.c.l.b16 %v45
  %v322 = vunpack.c.l.b16 %v46
  %v323 = vunpack.c.l.b16 %v47
  %v324 = vunpack.c.l.b16 %v48
  %v325 = vunpack.c.l.b16 %v49
  %v326 = vunpack.c.l.b16 %v50
  %v327 = vunpack.c.l.b16 %v51
  %v328 = vpack.c.b16 %v321, %v320
  %v329 = vpack.c.b16 %v323, %v322
  %v330 = vpack.c.b16 %v325, %v324
  %v331 = vpack.c.b16 %v327, %v326
  %vm336 = vcmask 523264
  %v338 = vsel %vm336, %v311, 0
  %340 = vmatprep.subr.bf16.mxu0 0
  %341 = vmatpush1.bf16.msra.mxu0 %v328
  %342 = vmatprep.subr.bf16.mxu0 0
  %343 = vmatpush1.bf16.msra.mxu0 %v329
  %344 = vmatprep.subr.bf16.mxu0 0
  %345 = vmatpush1.bf16.msra.mxu0 %v330
  %346 = vmatprep.subr.bf16.mxu0 0
  %347 = vmatpush1.bf16.msra.mxu0 %v331
  %348 = vmatprep.subr.bf16.mxu0 0
  %349 = vmatpush1.bf16.msra.mxu0 0
  %350 = vmatprep.subr.bf16.mxu0 0
  %351 = vmatpush1.bf16.msra.mxu0 0
  %352 = vmatprep.subr.bf16.mxu0 0
  %353 = vmatpush1.bf16.msra.mxu0 0
  %354 = vmatprep.subr.bf16.mxu0 0
  %355 = vmatpush1.bf16.msra.mxu0 0
  %356 = vmatprep.subr.bf16.mxu0 0
  %357 = vmatpush1.bf16.msra.mxu0 0
  %358 = vmatprep.subr.bf16.mxu0 0
  %359 = vmatpush1.bf16.msra.mxu0 0
  %360 = vmatprep.subr.bf16.mxu0 0
  %361 = vmatpush1.bf16.msra.mxu0 0
  %362 = vmatprep.subr.bf16.mxu0 0
  %363 = vmatpush1.bf16.msra.mxu0 0
  %364 = vmatprep.subr.bf16.mxu0 0
  %365 = vmatpush1.bf16.msra.mxu0 0
  %366 = vmatprep.subr.bf16.mxu0 0
  %367 = vmatpush1.bf16.msra.mxu0 0
  %368 = vmatprep.subr.bf16.mxu0 0
  %369 = vmatpush1.bf16.msra.mxu0 0
  %370 = vmatprep.subr.bf16.mxu0 0
  %371 = vmatpush1.bf16.msra.mxu0 0
  %372 = vmatprep.mubr.bf16.mxu0 0
  %373 = vmatmul.mubr.bf16.gmra.mrb[0].mxu0 %v338
  %v374 = vpop.f32.mrb[0].mxu0
  %v375 = vadd.f32 %v57, %v374
  %v376 = vpop.f32.mrb[0].mxu0
  %v377 = vpop.f32.mrb[0].mxu0
  %v378 = vpop.f32.mrb[0].mxu0
  %379 = vdwg.mxu0
  %v380 = vxor.u32 %v375, 2147483648
  %v381 = vmul.f32 %v380, 1.442695
  %v382 = vpow.pop %v381
  %v383 = vadd.f32 %v382, 1.0
  %v384 = vrcp.pop %v383
  %v385 = vmul.f32 1.0, %v384
  %v386 = vtanh.pop %v375
  %387 = vrot.lane.b32.xlu0 %v385, 96
  %v388 = vpop.permute.xlu0 %387
  %389 = vrot.lane.b32.xlu0 %v386, 64
  %v390 = vpop.permute.xlu0 %389
  %391 = vrot.lane.b32.xlu0 %v385, 32
  %v392 = vpop.permute.xlu0 %391
  %v393 = vmul.f32 %v388, 0.0
  %v394 = vmul.f32 %v385, %v390
  %v395 = vadd.f32 %v393, %v394
  %v396 = vtanh.pop %v395
  %v397 = vmul.f32 %v392, %v396
  %v398 = vpack.c.bf16 %v309, %v309
  %v400 = vsel %vm184, %v398, 0
  %402 = vmatprep.subr.bf16.mxu0 0
  %403 = vmatpush1.bf16.msra.mxu0 %v180
  %404 = vmatprep.subr.bf16.mxu0 0
  %405 = vmatpush1.bf16.msra.mxu0 %v181
  %406 = vmatprep.subr.bf16.mxu0 0
  %407 = vmatpush1.bf16.msra.mxu0 0
  %408 = vmatprep.subr.bf16.mxu0 0
  %409 = vmatpush1.bf16.msra.mxu0 0
  %410 = vmatprep.subr.bf16.mxu0 0
  %411 = vmatpush1.bf16.msra.mxu0 0
  %412 = vmatprep.subr.bf16.mxu0 0
  %413 = vmatpush1.bf16.msra.mxu0 0
  %414 = vmatprep.subr.bf16.mxu0 0
  %415 = vmatpush1.bf16.msra.mxu0 0
  %416 = vmatprep.subr.bf16.mxu0 0
  %417 = vmatpush1.bf16.msra.mxu0 0
  %418 = vmatprep.subr.bf16.mxu0 0
  %419 = vmatpush1.bf16.msra.mxu0 0
  %420 = vmatprep.subr.bf16.mxu0 0
  %421 = vmatpush1.bf16.msra.mxu0 0
  %422 = vmatprep.subr.bf16.mxu0 0
  %423 = vmatpush1.bf16.msra.mxu0 0
  %424 = vmatprep.subr.bf16.mxu0 0
  %425 = vmatpush1.bf16.msra.mxu0 0
  %426 = vmatprep.subr.bf16.mxu0 0
  %427 = vmatpush1.bf16.msra.mxu0 0
  %428 = vmatprep.subr.bf16.mxu0 0
  %429 = vmatpush1.bf16.msra.mxu0 0
  %430 = vmatprep.subr.bf16.mxu0 0
  %431 = vmatpush1.bf16.msra.mxu0 0
  %432 = vmatprep.subr.bf16.mxu0 0
  %433 = vmatpush1.bf16.msra.mxu0 0
  %434 = vmatprep.mubr.bf16.mxu0 0
  %435 = vmatmul.mubr.bf16.gmra.mrb[0].mxu0 %v400
  %v436 = vpop.f32.mrb[0].mxu0
  %v437 = vadd.f32 0.0, %v436
  %v438 = vpop.f32.mrb[0].mxu0
  %v439 = vpop.f32.mrb[0].mxu0
  %v440 = vpop.f32.mrb[0].mxu0
  %441 = vdwg.mxu0
  %v442 = vadd.f32 %v150, %v437
  %v443 = vxor.u32 %v442, 2147483648
  %v444 = vmul.f32 %v443, 1.442695
  %v445 = vpow.pop %v444
  %v446 = vadd.f32 %v445, 1.0
  %v447 = vrcp.pop %v446
  %v448 = vmul.f32 1.0, %v447
  %v449 = vtanh.pop %v442
  %450 = vrot.lane.b32.xlu0 %v448, 96
  %v451 = vpop.permute.xlu0 %450
  %452 = vrot.lane.b32.xlu0 %v449, 64
  %v453 = vpop.permute.xlu0 %452
  %454 = vrot.lane.b32.xlu0 %v448, 32
  %v455 = vpop.permute.xlu0 %454
  %v456 = vmul.f32 %v451, %v307
  %v457 = vmul.f32 %v448, %v453
  %v458 = vadd.f32 %v456, %v457
  %v459 = vtanh.pop %v458
  %v460 = vmul.f32 %v455, %v459
  %462 = vrot.lane.b32.xlu0 %v397, 32
  %v463 = vpop.permute.xlu0 %462
  %v465 = vsel %vm184, %v309, %v463
  %v466 = vpack.c.bf16 %v465, %v465
  %v468 = vsel %vm336, %v466, 0
  %470 = vmatprep.subr.bf16.mxu0 0
  %471 = vmatpush1.bf16.msra.mxu0 %v328
  %472 = vmatprep.subr.bf16.mxu0 0
  %473 = vmatpush1.bf16.msra.mxu0 %v329
  %474 = vmatprep.subr.bf16.mxu0 0
  %475 = vmatpush1.bf16.msra.mxu0 %v330
  %476 = vmatprep.subr.bf16.mxu0 0
  %477 = vmatpush1.bf16.msra.mxu0 %v331
  %478 = vmatprep.subr.bf16.mxu0 0
  %479 = vmatpush1.bf16.msra.mxu0 0
  %480 = vmatprep.subr.bf16.mxu0 0
  %481 = vmatpush1.bf16.msra.mxu0 0
  %482 = vmatprep.subr.bf16.mxu0 0
  %483 = vmatpush1.bf16.msra.mxu0 0
  %484 = vmatprep.subr.bf16.mxu0 0
  %485 = vmatpush1.bf16.msra.mxu0 0
  %486 = vmatprep.subr.bf16.mxu0 0
  %487 = vmatpush1.bf16.msra.mxu0 0
  %488 = vmatprep.subr.bf16.mxu0 0
  %489 = vmatpush1.bf16.msra.mxu0 0
  %490 = vmatprep.subr.bf16.mxu0 0
  %491 = vmatpush1.bf16.msra.mxu0 0
  %492 = vmatprep.subr.bf16.mxu0 0
  %493 = vmatpush1.bf16.msra.mxu0 0
  %494 = vmatprep.subr.bf16.mxu0 0
  %495 = vmatpush1.bf16.msra.mxu0 0
  %496 = vmatprep.subr.bf16.mxu0 0
  %497 = vmatpush1.bf16.msra.mxu0 0
  %498 = vmatprep.subr.bf16.mxu0 0
  %499 = vmatpush1.bf16.msra.mxu0 0
  %500 = vmatprep.subr.bf16.mxu0 0
  %501 = vmatpush1.bf16.msra.mxu0 0
  %502 = vmatprep.mubr.bf16.mxu0 0
  %503 = vmatmul.mubr.bf16.gmra.mrb[0].mxu0 %v468
  %v504 = vpop.f32.mrb[0].mxu0
  %v505 = vadd.f32 %v57, %v504
  %v506 = vpop.f32.mrb[0].mxu0
  %v507 = vpop.f32.mrb[0].mxu0
  %v508 = vpop.f32.mrb[0].mxu0
  %509 = vdwg.mxu0
  %v510 = vxor.u32 %v505, 2147483648
  %v511 = vmul.f32 %v510, 1.442695
  %v512 = vpow.pop %v511
  %v513 = vadd.f32 %v512, 1.0
  %v514 = vrcp.pop %v513
  %v515 = vmul.f32 1.0, %v514
  %v516 = vtanh.pop %v505
  %517 = vrot.lane.b32.xlu0 %v515, 96
  %v518 = vpop.permute.xlu0 %517
  %519 = vrot.lane.b32.xlu0 %v516, 64
  %v520 = vpop.permute.xlu0 %519
  %521 = vrot.lane.b32.xlu0 %v515, 32
  %v522 = vpop.permute.xlu0 %521
  %v523 = vmul.f32 %v518, %v395
  %v524 = vmul.f32 %v515, %v520
  %v525 = vadd.f32 %v523, %v524
  %v526 = vtanh.pop %v525
  %v527 = vmul.f32 %v522, %v526
  %v528 = vpack.c.bf16 %v460, %v460
  %v530 = vsel %vm184, %v528, 0
  %532 = vmatprep.subr.bf16.mxu0 0
  %533 = vmatpush1.bf16.msra.mxu0 %v180
  %534 = vmatprep.subr.bf16.mxu0 0
  %535 = vmatpush1.bf16.msra.mxu0 %v181
  %536 = vmatprep.subr.bf16.mxu0 0
  %537 = vmatpush1.bf16.msra.mxu0 0
  %538 = vmatprep.subr.bf16.mxu0 0
  %539 = vmatpush1.bf16.msra.mxu0 0
  %540 = vmatprep.subr.bf16.mxu0 0
  %541 = vmatpush1.bf16.msra.mxu0 0
  %542 = vmatprep.subr.bf16.mxu0 0
  %543 = vmatpush1.bf16.msra.mxu0 0
  %544 = vmatprep.subr.bf16.mxu0 0
  %545 = vmatpush1.bf16.msra.mxu0 0
  %546 = vmatprep.subr.bf16.mxu0 0
  %547 = vmatpush1.bf16.msra.mxu0 0
  %548 = vmatprep.subr.bf16.mxu0 0
  %549 = vmatpush1.bf16.msra.mxu0 0
  %550 = vmatprep.subr.bf16.mxu0 0
  %551 = vmatpush1.bf16.msra.mxu0 0
  %552 = vmatprep.subr.bf16.mxu0 0
  %553 = vmatpush1.bf16.msra.mxu0 0
  %554 = vmatprep.subr.bf16.mxu0 0
  %555 = vmatpush1.bf16.msra.mxu0 0
  %556 = vmatprep.subr.bf16.mxu0 0
  %557 = vmatpush1.bf16.msra.mxu0 0
  %558 = vmatprep.subr.bf16.mxu0 0
  %559 = vmatpush1.bf16.msra.mxu0 0
  %560 = vmatprep.subr.bf16.mxu0 0
  %561 = vmatpush1.bf16.msra.mxu0 0
  %562 = vmatprep.subr.bf16.mxu0 0
  %563 = vmatpush1.bf16.msra.mxu0 0
  %564 = vmatprep.mubr.bf16.mxu0 0
  %565 = vmatmul.mubr.bf16.gmra.mrb[0].mxu0 %v530
  %v566 = vpop.f32.mrb[0].mxu0
  %v567 = vadd.f32 0.0, %v566
  %v568 = vpop.f32.mrb[0].mxu0
  %v569 = vpop.f32.mrb[0].mxu0
  %v570 = vpop.f32.mrb[0].mxu0
  %571 = vdwg.mxu0
  %v572 = vadd.f32 %v153, %v567
  %v573 = vxor.u32 %v572, 2147483648
  %v574 = vmul.f32 %v573, 1.442695
  %v575 = vpow.pop %v574
  %v576 = vadd.f32 %v575, 1.0
  %v577 = vrcp.pop %v576
  %v578 = vmul.f32 1.0, %v577
  %v579 = vtanh.pop %v572
  %580 = vrot.lane.b32.xlu0 %v578, 96
  %v581 = vpop.permute.xlu0 %580
  %582 = vrot.lane.b32.xlu0 %v579, 64
  %v583 = vpop.permute.xlu0 %582
  %584 = vrot.lane.b32.xlu0 %v578, 32
  %v585 = vpop.permute.xlu0 %584
  %v586 = vmul.f32 %v581, %v458
  %v587 = vmul.f32 %v578, %v583
  %v588 = vadd.f32 %v586, %v587
  %v589 = vtanh.pop %v588
  %v590 = vmul.f32 %v585, %v589
  %592 = vrot.lane.b32.xlu0 %v527, 32
  %v593 = vpop.permute.xlu0 %592
  %v595 = vsel %vm184, %v460, %v593
  %v596 = vpack.c.bf16 %v595, %v595
  %v598 = vsel %vm336, %v596, 0
  %600 = vmatprep.subr.bf16.mxu0 0
  %601 = vmatpush1.bf16.msra.mxu0 %v328
  %602 = vmatprep.subr.bf16.mxu0 0
  %603 = vmatpush1.bf16.msra.mxu0 %v329
  %604 = vmatprep.subr.bf16.mxu0 0
  %605 = vmatpush1.bf16.msra.mxu0 %v330
  %606 = vmatprep.subr.bf16.mxu0 0
  %607 = vmatpush1.bf16.msra.mxu0 %v331
  %608 = vmatprep.subr.bf16.mxu0 0
  %609 = vmatpush1.bf16.msra.mxu0 0
  %610 = vmatprep.subr.bf16.mxu0 0
  %611 = vmatpush1.bf16.msra.mxu0 0
  %612 = vmatprep.subr.bf16.mxu0 0
  %613 = vmatpush1.bf16.msra.mxu0 0
  %614 = vmatprep.subr.bf16.mxu0 0
  %615 = vmatpush1.bf16.msra.mxu0 0
  %616 = vmatprep.subr.bf16.mxu0 0
  %617 = vmatpush1.bf16.msra.mxu0 0
  %618 = vmatprep.subr.bf16.mxu0 0
  %619 = vmatpush1.bf16.msra.mxu0 0
  %620 = vmatprep.subr.bf16.mxu0 0
  %621 = vmatpush1.bf16.msra.mxu0 0
  %622 = vmatprep.subr.bf16.mxu0 0
  %623 = vmatpush1.bf16.msra.mxu0 0
  %624 = vmatprep.subr.bf16.mxu0 0
  %625 = vmatpush1.bf16.msra.mxu0 0
  %626 = vmatprep.subr.bf16.mxu0 0
  %627 = vmatpush1.bf16.msra.mxu0 0
  %628 = vmatprep.subr.bf16.mxu0 0
  %629 = vmatpush1.bf16.msra.mxu0 0
  %630 = vmatprep.subr.bf16.mxu0 0
  %631 = vmatpush1.bf16.msra.mxu0 0
  %632 = vmatprep.mubr.bf16.mxu0 0
  %633 = vmatmul.mubr.bf16.gmra.mrb[0].mxu0 %v598
  %v634 = vpop.f32.mrb[0].mxu0
  %v635 = vadd.f32 %v57, %v634
  %v636 = vpop.f32.mrb[0].mxu0
  %v637 = vpop.f32.mrb[0].mxu0
  %v638 = vpop.f32.mrb[0].mxu0
  %639 = vdwg.mxu0
  %v640 = vxor.u32 %v635, 2147483648
  %v641 = vmul.f32 %v640, 1.442695
  %v642 = vpow.pop %v641
  %v643 = vadd.f32 %v642, 1.0
  %v644 = vrcp.pop %v643
  %v645 = vmul.f32 1.0, %v644
  %v646 = vtanh.pop %v635
  %647 = vrot.lane.b32.xlu0 %v645, 96
  %v648 = vpop.permute.xlu0 %647
  %649 = vrot.lane.b32.xlu0 %v646, 64
  %v650 = vpop.permute.xlu0 %649
  %651 = vrot.lane.b32.xlu0 %v645, 32
  %v652 = vpop.permute.xlu0 %651
  %v653 = vmul.f32 %v648, %v525
  %v654 = vmul.f32 %v645, %v650
  %v655 = vadd.f32 %v653, %v654
  %v656 = vtanh.pop %v655
  %v657 = vmul.f32 %v652, %v656
  %v658 = vpack.c.bf16 %v590, %v590
  %v660 = vsel %vm184, %v658, 0
  %662 = vmatprep.subr.bf16.mxu0 0
  %663 = vmatpush1.bf16.msra.mxu0 %v180
  %664 = vmatprep.subr.bf16.mxu0 0
  %665 = vmatpush1.bf16.msra.mxu0 %v181
  %666 = vmatprep.subr.bf16.mxu0 0
  %667 = vmatpush1.bf16.msra.mxu0 0
  %668 = vmatprep.subr.bf16.mxu0 0
  %669 = vmatpush1.bf16.msra.mxu0 0
  %670 = vmatprep.subr.bf16.mxu0 0
  %671 = vmatpush1.bf16.msra.mxu0 0
  %672 = vmatprep.subr.bf16.mxu0 0
  %673 = vmatpush1.bf16.msra.mxu0 0
  %674 = vmatprep.subr.bf16.mxu0 0
  %675 = vmatpush1.bf16.msra.mxu0 0
  %676 = vmatprep.subr.bf16.mxu0 0
  %677 = vmatpush1.bf16.msra.mxu0 0
  %678 = vmatprep.subr.bf16.mxu0 0
  %679 = vmatpush1.bf16.msra.mxu0 0
  %680 = vmatprep.subr.bf16.mxu0 0
  %681 = vmatpush1.bf16.msra.mxu0 0
  %682 = vmatprep.subr.bf16.mxu0 0
  %683 = vmatpush1.bf16.msra.mxu0 0
  %684 = vmatprep.subr.bf16.mxu0 0
  %685 = vmatpush1.bf16.msra.mxu0 0
  %686 = vmatprep.subr.bf16.mxu0 0
  %687 = vmatpush1.bf16.msra.mxu0 0
  %688 = vmatprep.subr.bf16.mxu0 0
  %689 = vmatpush1.bf16.msra.mxu0 0
  %690 = vmatprep.subr.bf16.mxu0 0
  %691 = vmatpush1.bf16.msra.mxu0 0
  %692 = vmatprep.subr.bf16.mxu0 0
  %693 = vmatpush1.bf16.msra.mxu0 0
  %694 = vmatprep.mubr.bf16.mxu0 0
  %695 = vmatmul.mubr.bf16.gmra.mrb[0].mxu0 %v660
  %v696 = vpop.f32.mrb[0].mxu0
  %v697 = vadd.f32 0.0, %v696
  %v698 = vpop.f32.mrb[0].mxu0
  %v699 = vpop.f32.mrb[0].mxu0
  %v700 = vpop.f32.mrb[0].mxu0
  %701 = vdwg.mxu0
  %v702 = vadd.f32 %v158, %v697
  %v703 = vxor.u32 %v702, 2147483648
  %v704 = vmul.f32 %v703, 1.442695
  %v705 = vpow.pop %v704
  %v706 = vadd.f32 %v705, 1.0
  %v707 = vrcp.pop %v706
  %v708 = vmul.f32 1.0, %v707
  %v709 = vtanh.pop %v702
  %710 = vrot.lane.b32.xlu0 %v708, 96
  %v711 = vpop.permute.xlu0 %710
  %712 = vrot.lane.b32.xlu0 %v709, 64
  %v713 = vpop.permute.xlu0 %712
  %714 = vrot.lane.b32.xlu0 %v708, 32
  %v715 = vpop.permute.xlu0 %714
  %v716 = vmul.f32 %v711, %v588
  %v717 = vmul.f32 %v708, %v713
  %v718 = vadd.f32 %v716, %v717
  %v719 = vtanh.pop %v718
  %v720 = vmul.f32 %v715, %v719
  %722 = vrot.lane.b32.xlu0 %v657, 32
  %v723 = vpop.permute.xlu0 %722
  %v725 = vsel %vm184, %v590, %v723
  %v726 = vpack.c.bf16 %v725, %v725
  %v728 = vsel %vm336, %v726, 0
  %730 = vmatprep.subr.bf16.mxu0 0
  %731 = vmatpush1.bf16.msra.mxu0 %v328
  %732 = vmatprep.subr.bf16.mxu0 0
  %733 = vmatpush1.bf16.msra.mxu0 %v329
  %734 = vmatprep.subr.bf16.mxu0 0
  %735 = vmatpush1.bf16.msra.mxu0 %v330
  %736 = vmatprep.subr.bf16.mxu0 0
  %737 = vmatpush1.bf16.msra.mxu0 %v331
  %738 = vmatprep.subr.bf16.mxu0 0
  %739 = vmatpush1.bf16.msra.mxu0 0
  %740 = vmatprep.subr.bf16.mxu0 0
  %741 = vmatpush1.bf16.msra.mxu0 0
  %742 = vmatprep.subr.bf16.mxu0 0
  %743 = vmatpush1.bf16.msra.mxu0 0
  %744 = vmatprep.subr.bf16.mxu0 0
  %745 = vmatpush1.bf16.msra.mxu0 0
  %746 = vmatprep.subr.bf16.mxu0 0
  %747 = vmatpush1.bf16.msra.mxu0 0
  %748 = vmatprep.subr.bf16.mxu0 0
  %749 = vmatpush1.bf16.msra.mxu0 0
  %750 = vmatprep.subr.bf16.mxu0 0
  %751 = vmatpush1.bf16.msra.mxu0 0
  %752 = vmatprep.subr.bf16.mxu0 0
  %753 = vmatpush1.bf16.msra.mxu0 0
  %754 = vmatprep.subr.bf16.mxu0 0
  %755 = vmatpush1.bf16.msra.mxu0 0
  %756 = vmatprep.subr.bf16.mxu0 0
  %757 = vmatpush1.bf16.msra.mxu0 0
  %758 = vmatprep.subr.bf16.mxu0 0
  %759 = vmatpush1.bf16.msra.mxu0 0
  %760 = vmatprep.subr.bf16.mxu0 0
  %761 = vmatpush1.bf16.msra.mxu0 0
  %762 = vmatprep.mubr.bf16.mxu0 0
  %763 = vmatmul.mubr.bf16.gmra.mrb[0].mxu0 %v728
  %v764 = vpop.f32.mrb[0].mxu0
  %v765 = vadd.f32 %v57, %v764
  %v766 = vpop.f32.mrb[0].mxu0
  %v767 = vpop.f32.mrb[0].mxu0
  %v768 = vpop.f32.mrb[0].mxu0
  %769 = vdwg.mxu0
  %v770 = vxor.u32 %v765, 2147483648
  %v771 = vmul.f32 %v770, 1.442695
  %v772 = vpow.pop %v771
  %v773 = vadd.f32 %v772, 1.0
  %v774 = vrcp.pop %v773
  %v775 = vmul.f32 1.0, %v774
  %v776 = vtanh.pop %v765
  %777 = vrot.lane.b32.xlu0 %v775, 96
  %v778 = vpop.permute.xlu0 %777
  %779 = vrot.lane.b32.xlu0 %v776, 64
  %v780 = vpop.permute.xlu0 %779
  %781 = vrot.lane.b32.xlu0 %v775, 32
  %v782 = vpop.permute.xlu0 %781
  %v783 = vmul.f32 %v778, %v655
  %v784 = vmul.f32 %v775, %v780
  %v785 = vadd.f32 %v783, %v784
  %v786 = vtanh.pop %v785
  %v787 = vmul.f32 %v782, %v786
  %v788 = vpack.c.bf16 %v720, %v720
  %v790 = vsel %vm184, %v788, 0
  %792 = vmatprep.subr.bf16.mxu0 0
  %793 = vmatpush1.bf16.msra.mxu0 %v180
  %794 = vmatprep.subr.bf16.mxu0 0
  %795 = vmatpush1.bf16.msra.mxu0 %v181
  %796 = vmatprep.subr.bf16.mxu0 0
  %797 = vmatpush1.bf16.msra.mxu0 0
  %798 = vmatprep.subr.bf16.mxu0 0
  %799 = vmatpush1.bf16.msra.mxu0 0
  %800 = vmatprep.subr.bf16.mxu0 0
  %801 = vmatpush1.bf16.msra.mxu0 0
  %802 = vmatprep.subr.bf16.mxu0 0
  %803 = vmatpush1.bf16.msra.mxu0 0
  %804 = vmatprep.subr.bf16.mxu0 0
  %805 = vmatpush1.bf16.msra.mxu0 0
  %806 = vmatprep.subr.bf16.mxu0 0
  %807 = vmatpush1.bf16.msra.mxu0 0
  %808 = vmatprep.subr.bf16.mxu0 0
  %809 = vmatpush1.bf16.msra.mxu0 0
  %810 = vmatprep.subr.bf16.mxu0 0
  %811 = vmatpush1.bf16.msra.mxu0 0
  %812 = vmatprep.subr.bf16.mxu0 0
  %813 = vmatpush1.bf16.msra.mxu0 0
  %814 = vmatprep.subr.bf16.mxu0 0
  %815 = vmatpush1.bf16.msra.mxu0 0
  %816 = vmatprep.subr.bf16.mxu0 0
  %817 = vmatpush1.bf16.msra.mxu0 0
  %818 = vmatprep.subr.bf16.mxu0 0
  %819 = vmatpush1.bf16.msra.mxu0 0
  %820 = vmatprep.subr.bf16.mxu0 0
  %821 = vmatpush1.bf16.msra.mxu0 0
  %822 = vmatprep.subr.bf16.mxu0 0
  %823 = vmatpush1.bf16.msra.mxu0 0
  %824 = vmatprep.mubr.bf16.mxu0 0
  %825 = vmatmul.mubr.bf16.gmra.mrb[0].mxu0 %v790
  %v826 = vpop.f32.mrb[0].mxu0
  %v827 = vadd.f32 0.0, %v826
  %v828 = vpop.f32.mrb[0].mxu0
  %v829 = vpop.f32.mrb[0].mxu0
  %v830 = vpop.f32.mrb[0].mxu0
  %831 = vdwg.mxu0
  %v832 = vadd.f32 %v161, %v827
  %v833 = vxor.u32 %v832, 2147483648
  %v834 = vmul.f32 %v833, 1.442695
  %v835 = vpow.pop %v834
  %v836 = vadd.f32 %v835, 1.0
  %v837 = vrcp.pop %v836
  %v838 = vmul.f32 1.0, %v837
  %v839 = vtanh.pop %v832
  %840 = vrot.lane.b32.xlu0 %v838, 96
  %v841 = vpop.permute.xlu0 %840
  %842 = vrot.lane.b32.xlu0 %v839, 64
  %v843 = vpop.permute.xlu0 %842
  %844 = vrot.lane.b32.xlu0 %v838, 32
  %v845 = vpop.permute.xlu0 %844
  %v846 = vmul.f32 %v841, %v718
  %v847 = vmul.f32 %v838, %v843
  %v848 = vadd.f32 %v846, %v847
  %v849 = vtanh.pop %v848
  %v850 = vmul.f32 %v845, %v849
  %852 = vrot.lane.b32.xlu0 %v787, 32
  %v853 = vpop.permute.xlu0 %852
  %v855 = vsel %vm184, %v720, %v853
  %v856 = vpack.c.bf16 %v855, %v855
  %v858 = vsel %vm336, %v856, 0
  %860 = vmatprep.subr.bf16.mxu0 0
  %861 = vmatpush1.bf16.msra.mxu0 %v328
  %862 = vmatprep.subr.bf16.mxu0 0
  %863 = vmatpush1.bf16.msra.mxu0 %v329
  %864 = vmatprep.subr.bf16.mxu0 0
  %865 = vmatpush1.bf16.msra.mxu0 %v330
  %866 = vmatprep.subr.bf16.mxu0 0
  %867 = vmatpush1.bf16.msra.mxu0 %v331
  %868 = vmatprep.subr.bf16.mxu0 0
  %869 = vmatpush1.bf16.msra.mxu0 0
  %870 = vmatprep.subr.bf16.mxu0 0
  %871 = vmatpush1.bf16.msra.mxu0 0
  %872 = vmatprep.subr.bf16.mxu0 0
  %873 = vmatpush1.bf16.msra.mxu0 0
  %874 = vmatprep.subr.bf16.mxu0 0
  %875 = vmatpush1.bf16.msra.mxu0 0
  %876 = vmatprep.subr.bf16.mxu0 0
  %877 = vmatpush1.bf16.msra.mxu0 0
  %878 = vmatprep.subr.bf16.mxu0 0
  %879 = vmatpush1.bf16.msra.mxu0 0
  %880 = vmatprep.subr.bf16.mxu0 0
  %881 = vmatpush1.bf16.msra.mxu0 0
  %882 = vmatprep.subr.bf16.mxu0 0
  %883 = vmatpush1.bf16.msra.mxu0 0
  %884 = vmatprep.subr.bf16.mxu0 0
  %885 = vmatpush1.bf16.msra.mxu0 0
  %886 = vmatprep.subr.bf16.mxu0 0
  %887 = vmatpush1.bf16.msra.mxu0 0
  %888 = vmatprep.subr.bf16.mxu0 0
  %889 = vmatpush1.bf16.msra.mxu0 0
  %890 = vmatprep.subr.bf16.mxu0 0
  %891 = vmatpush1.bf16.msra.mxu0 0
  %892 = vmatprep.mubr.bf16.mxu0 0
  %893 = vmatmul.mubr.bf16.gmra.mrb[0].mxu0 %v858
  %v894 = vpop.f32.mrb[0].mxu0
  %v895 = vadd.f32 %v57, %v894
  %v896 = vpop.f32.mrb[0].mxu0
  %v897 = vpop.f32.mrb[0].mxu0
  %v898 = vpop.f32.mrb[0].mxu0
  %899 = vdwg.mxu0
  %v900 = vxor.u32 %v895, 2147483648
  %v901 = vmul.f32 %v900, 1.442695
  %v902 = vpow.pop %v901
  %v903 = vadd.f32 %v902, 1.0
  %v904 = vrcp.pop %v903
  %v905 = vmul.f32 1.0, %v904
  %v906 = vtanh.pop %v895
  %907 = vrot.lane.b32.xlu0 %v905, 96
  %v908 = vpop.permute.xlu0 %907
  %909 = vrot.lane.b32.xlu0 %v906, 64
  %v910 = vpop.permute.xlu0 %909
  %911 = vrot.lane.b32.xlu0 %v905, 32
  %v912 = vpop.permute.xlu0 %911
  %v913 = vmul.f32 %v908, %v785
  %v914 = vmul.f32 %v905, %v910
  %v915 = vadd.f32 %v913, %v914
  %v916 = vtanh.pop %v915
  %v917 = vmul.f32 %v912, %v916
  %v918 = vpack.c.bf16 %v850, %v850
  %v920 = vsel %vm184, %v918, 0
  %922 = vmatprep.subr.bf16.mxu0 0
  %923 = vmatpush1.bf16.msra.mxu0 %v180
  %924 = vmatprep.subr.bf16.mxu0 0
  %925 = vmatpush1.bf16.msra.mxu0 %v181
  %926 = vmatprep.subr.bf16.mxu0 0
  %927 = vmatpush1.bf16.msra.mxu0 0
  %928 = vmatprep.subr.bf16.mxu0 0
  %929 = vmatpush1.bf16.msra.mxu0 0
  %930 = vmatprep.subr.bf16.mxu0 0
  %931 = vmatpush1.bf16.msra.mxu0 0
  %932 = vmatprep.subr.bf16.mxu0 0
  %933 = vmatpush1.bf16.msra.mxu0 0
  %934 = vmatprep.subr.bf16.mxu0 0
  %935 = vmatpush1.bf16.msra.mxu0 0
  %936 = vmatprep.subr.bf16.mxu0 0
  %937 = vmatpush1.bf16.msra.mxu0 0
  %938 = vmatprep.subr.bf16.mxu0 0
  %939 = vmatpush1.bf16.msra.mxu0 0
  %940 = vmatprep.subr.bf16.mxu0 0
  %941 = vmatpush1.bf16.msra.mxu0 0
  %942 = vmatprep.subr.bf16.mxu0 0
  %943 = vmatpush1.bf16.msra.mxu0 0
  %944 = vmatprep.subr.bf16.mxu0 0
  %945 = vmatpush1.bf16.msra.mxu0 0
  %946 = vmatprep.subr.bf16.mxu0 0
  %947 = vmatpush1.bf16.msra.mxu0 0
  %948 = vmatprep.subr.bf16.mxu0 0
  %949 = vmatpush1.bf16.msra.mxu0 0
  %950 = vmatprep.subr.bf16.mxu0 0
  %951 = vmatpush1.bf16.msra.mxu0 0
  %952 = vmatprep.subr.bf16.mxu0 0
  %953 = vmatpush1.bf16.msra.mxu0 0
  %954 = vmatprep.mubr.bf16.mxu0 0
  %955 = vmatmul.mubr.bf16.gmra.mrb[0].mxu0 %v920
  %v956 = vpop.f32.mrb[0].mxu0
  %v957 = vadd.f32 0.0, %v956
  %v958 = vpop.f32.mrb[0].mxu0
  %v959 = vpop.f32.mrb[0].mxu0
  %v960 = vpop.f32.mrb[0].mxu0
  %961 = vdwg.mxu0
  %v962 = vadd.f32 %v166, %v957
  %v963 = vxor.u32 %v962, 2147483648
  %v964 = vmul.f32 %v963, 1.442695
  %v965 = vpow.pop %v964
  %v966 = vadd.f32 %v965, 1.0
  %v967 = vrcp.pop %v966
  %v968 = vmul.f32 1.0, %v967
  %v969 = vtanh.pop %v962
  %970 = vrot.lane.b32.xlu0 %v968, 96
  %v971 = vpop.permute.xlu0 %970
  %972 = vrot.lane.b32.xlu0 %v969, 64
  %v973 = vpop.permute.xlu0 %972
  %974 = vrot.lane.b32.xlu0 %v968, 32
  %v975 = vpop.permute.xlu0 %974
  %v976 = vmul.f32 %v971, %v848
  %v977 = vmul.f32 %v968, %v973
  %v978 = vadd.f32 %v976, %v977
  %v979 = vtanh.pop %v978
  %v980 = vmul.f32 %v975, %v979
  %982 = vrot.lane.b32.xlu0 %v917, 32
  %v983 = vpop.permute.xlu0 %982
  %v985 = vsel %vm184, %v850, %v983
  %v986 = vpack.c.bf16 %v985, %v985
  %v988 = vsel %vm336, %v986, 0
  %990 = vmatprep.subr.bf16.mxu0 0
  %991 = vmatpush1.bf16.msra.mxu0 %v328
  %992 = vmatprep.subr.bf16.mxu0 0
  %993 = vmatpush1.bf16.msra.mxu0 %v329
  %994 = vmatprep.subr.bf16.mxu0 0
  %995 = vmatpush1.bf16.msra.mxu0 %v330
  %996 = vmatprep.subr.bf16.mxu0 0
  %997 = vmatpush1.bf16.msra.mxu0 %v331
  %998 = vmatprep.subr.bf16.mxu0 0
  %999 = vmatpush1.bf16.msra.mxu0 0
  %1000 = vmatprep.subr.bf16.mxu0 0
  %1001 = vmatpush1.bf16.msra.mxu0 0
  %1002 = vmatprep.subr.bf16.mxu0 0
  %1003 = vmatpush1.bf16.msra.mxu0 0
  %1004 = vmatprep.subr.bf16.mxu0 0
  %1005 = vmatpush1.bf16.msra.mxu0 0
  %1006 = vmatprep.subr.bf16.mxu0 0
  %1007 = vmatpush1.bf16.msra.mxu0 0
  %1008 = vmatprep.subr.bf16.mxu0 0
  %1009 = vmatpush1.bf16.msra.mxu0 0
  %1010 = vmatprep.subr.bf16.mxu0 0
  %1011 = vmatpush1.bf16.msra.mxu0 0
  %1012 = vmatprep.subr.bf16.mxu0 0
  %1013 = vmatpush1.bf16.msra.mxu0 0
  %1014 = vmatprep.subr.bf16.mxu0 0
  %1015 = vmatpush1.bf16.msra.mxu0 0
  %1016 = vmatprep.subr.bf16.mxu0 0
  %1017 = vmatpush1.bf16.msra.mxu0 0
  %1018 = vmatprep.subr.bf16.mxu0 0
  %1019 = vmatpush1.bf16.msra.mxu0 0
  %1020 = vmatprep.subr.bf16.mxu0 0
  %1021 = vmatpush1.bf16.msra.mxu0 0
  %1022 = vmatprep.mubr.bf16.mxu0 0
  %1023 = vmatmul.mubr.bf16.gmra.mrb[0].mxu0 %v988
  %v1024 = vpop.f32.mrb[0].mxu0
  %v1025 = vadd.f32 %v57, %v1024
  %v1026 = vpop.f32.mrb[0].mxu0
  %v1027 = vpop.f32.mrb[0].mxu0
  %v1028 = vpop.f32.mrb[0].mxu0
  %1029 = vdwg.mxu0
  %v1030 = vxor.u32 %v1025, 2147483648
  %v1031 = vmul.f32 %v1030, 1.442695
  %v1032 = vpow.pop %v1031
  %v1033 = vadd.f32 %v1032, 1.0
  %v1034 = vrcp.pop %v1033
  %v1035 = vmul.f32 1.0, %v1034
  %v1036 = vtanh.pop %v1025
  %1037 = vrot.lane.b32.xlu0 %v1035, 96
  %v1038 = vpop.permute.xlu0 %1037
  %1039 = vrot.lane.b32.xlu0 %v1036, 64
  %v1040 = vpop.permute.xlu0 %1039
  %1041 = vrot.lane.b32.xlu0 %v1035, 32
  %v1042 = vpop.permute.xlu0 %1041
  %v1043 = vmul.f32 %v1038, %v915
  %v1044 = vmul.f32 %v1035, %v1040
  %v1045 = vadd.f32 %v1043, %v1044
  %v1046 = vtanh.pop %v1045
  %v1047 = vmul.f32 %v1042, %v1046
  %v1048 = vpack.c.bf16 %v980, %v980
  %v1050 = vsel %vm184, %v1048, 0
  %1052 = vmatprep.subr.bf16.mxu0 0
  %1053 = vmatpush1.bf16.msra.mxu0 %v180
  %1054 = vmatprep.subr.bf16.mxu0 0
  %1055 = vmatpush1.bf16.msra.mxu0 %v181
  %1056 = vmatprep.subr.bf16.mxu0 0
  %1057 = vmatpush1.bf16.msra.mxu0 0
  %1058 = vmatprep.subr.bf16.mxu0 0
  %1059 = vmatpush1.bf16.msra.mxu0 0
  %1060 = vmatprep.subr.bf16.mxu0 0
  %1061 = vmatpush1.bf16.msra.mxu0 0
  %1062 = vmatprep.subr.bf16.mxu0 0
  %1063 = vmatpush1.bf16.msra.mxu0 0
  %1064 = vmatprep.subr.bf16.mxu0 0
  %1065 = vmatpush1.bf16.msra.mxu0 0
  %1066 = vmatprep.subr.bf16.mxu0 0
  %1067 = vmatpush1.bf16.msra.mxu0 0
  %1068 = vmatprep.subr.bf16.mxu0 0
  %1069 = vmatpush1.bf16.msra.mxu0 0
  %1070 = vmatprep.subr.bf16.mxu0 0
  %1071 = vmatpush1.bf16.msra.mxu0 0
  %1072 = vmatprep.subr.bf16.mxu0 0
  %1073 = vmatpush1.bf16.msra.mxu0 0
  %1074 = vmatprep.subr.bf16.mxu0 0
  %1075 = vmatpush1.bf16.msra.mxu0 0
  %1076 = vmatprep.subr.bf16.mxu0 0
  %1077 = vmatpush1.bf16.msra.mxu0 0
  %1078 = vmatprep.subr.bf16.mxu0 0
  %1079 = vmatpush1.bf16.msra.mxu0 0
  %1080 = vmatprep.subr.bf16.mxu0 0
  %1081 = vmatpush1.bf16.msra.mxu0 0
  %1082 = vmatprep.subr.bf16.mxu0 0
  %1083 = vmatpush1.bf16.msra.mxu0 0
  %1084 = vmatprep.mubr.bf16.mxu0 0
  %1085 = vmatmul.mubr.bf16.gmra.mrb[0].mxu0 %v1050
  %v1086 = vpop.f32.mrb[0].mxu0
  %v1087 = vadd.f32 0.0, %v1086
  %v1088 = vpop.f32.mrb[0].mxu0
  %v1089 = vpop.f32.mrb[0].mxu0
  %v1090 = vpop.f32.mrb[0].mxu0
  %1091 = vdwg.mxu0
  %v1092 = vadd.f32 %v169, %v1087
  %v1093 = vxor.u32 %v1092, 2147483648
  %v1094 = vmul.f32 %v1093, 1.442695
  %v1095 = vpow.pop %v1094
  %v1096 = vadd.f32 %v1095, 1.0
  %v1097 = vrcp.pop %v1096
  %v1098 = vmul.f32 1.0, %v1097
  %v1099 = vtanh.pop %v1092
  %1100 = vrot.lane.b32.xlu0 %v1098, 96
  %v1101 = vpop.permute.xlu0 %1100
  %1102 = vrot.lane.b32.xlu0 %v1099, 64
  %v1103 = vpop.permute.xlu0 %1102
  %1104 = vrot.lane.b32.xlu0 %v1098, 32
  %v1105 = vpop.permute.xlu0 %1104
  %v1106 = vmul.f32 %v1101, %v978
  %v1107 = vmul.f32 %v1098, %v1103
  %v1108 = vadd.f32 %v1106, %v1107
  %v1109 = vtanh.pop %v1108
  %v1110 = vmul.f32 %v1105, %v1109
  %1112 = vrot.lane.b32.xlu0 %v1047, 32
  %v1113 = vpop.permute.xlu0 %1112
  %v1115 = vsel %vm184, %v980, %v1113
  %v1116 = vpack.c.bf16 %v1115, %v1115
  %v1118 = vsel %vm336, %v1116, 0
  %1120 = vmatprep.subr.bf16.mxu0 0
  %1121 = vmatpush1.bf16.msra.mxu0 %v328
  %1122 = vmatprep.subr.bf16.mxu0 0
  %1123 = vmatpush1.bf16.msra.mxu0 %v329
  %1124 = vmatprep.subr.bf16.mxu0 0
  %1125 = vmatpush1.bf16.msra.mxu0 %v330
  %1126 = vmatprep.subr.bf16.mxu0 0
  %1127 = vmatpush1.bf16.msra.mxu0 %v331
  %1128 = vmatprep.subr.bf16.mxu0 0
  %1129 = vmatpush1.bf16.msra.mxu0 0
  %1130 = vmatprep.subr.bf16.mxu0 0
  %1131 = vmatpush1.bf16.msra.mxu0 0
  %1132 = vmatprep.subr.bf16.mxu0 0
  %1133 = vmatpush1.bf16.msra.mxu0 0
  %1134 = vmatprep.subr.bf16.mxu0 0
  %1135 = vmatpush1.bf16.msra.mxu0 0
  %1136 = vmatprep.subr.bf16.mxu0 0
  %1137 = vmatpush1.bf16.msra.mxu0 0
  %1138 = vmatprep.subr.bf16.mxu0 0
  %1139 = vmatpush1.bf16.msra.mxu0 0
  %1140 = vmatprep.subr.bf16.mxu0 0
  %1141 = vmatpush1.bf16.msra.mxu0 0
  %1142 = vmatprep.subr.bf16.mxu0 0
  %1143 = vmatpush1.bf16.msra.mxu0 0
  %1144 = vmatprep.subr.bf16.mxu0 0
  %1145 = vmatpush1.bf16.msra.mxu0 0
  %1146 = vmatprep.subr.bf16.mxu0 0
  %1147 = vmatpush1.bf16.msra.mxu0 0
  %1148 = vmatprep.subr.bf16.mxu0 0
  %1149 = vmatpush1.bf16.msra.mxu0 0
  %1150 = vmatprep.subr.bf16.mxu0 0
  %1151 = vmatpush1.bf16.msra.mxu0 0
  %1152 = vmatprep.mubr.bf16.mxu0 0
  %1153 = vmatmul.mubr.bf16.gmra.mrb[0].mxu0 %v1118
  %v1154 = vpop.f32.mrb[0].mxu0
  %v1155 = vadd.f32 %v57, %v1154
  %v1156 = vpop.f32.mrb[0].mxu0
  %v1157 = vpop.f32.mrb[0].mxu0
  %v1158 = vpop.f32.mrb[0].mxu0
  %1159 = vdwg.mxu0
  %v1160 = vxor.u32 %v1155, 2147483648
  %v1161 = vmul.f32 %v1160, 1.442695
  %v1162 = vpow.pop %v1161
  %v1163 = vadd.f32 %v1162, 1.0
  %v1164 = vrcp.pop %v1163
  %v1165 = vmul.f32 1.0, %v1164
  %v1166 = vtanh.pop %v1155
  %1167 = vrot.lane.b32.xlu0 %v1165, 96
  %v1168 = vpop.permute.xlu0 %1167
  %1169 = vrot.lane.b32.xlu0 %v1166, 64
  %v1170 = vpop.permute.xlu0 %1169
  %1171 = vrot.lane.b32.xlu0 %v1165, 32
  %v1172 = vpop.permute.xlu0 %1171
  %v1173 = vmul.f32 %v1168, %v1045
  %v1174 = vmul.f32 %v1165, %v1170
  %v1175 = vadd.f32 %v1173, %v1174
  %v1176 = vtanh.pop %v1175
  %v1177 = vmul.f32 %v1172, %v1176
  %1179 = vrot.lane.b32.xlu0 %v1177, 32
  %v1180 = vpop.permute.xlu0 %1179
  %v1182 = vsel %vm184, %v1110, %v1180
  %v1183 = vpack.c.bf16 %v1182, %v1182
  %v1185 = vsel %vm336, %v1183, 0
  %1187 = vmatprep.subr.bf16.mxu0 0
  %1188 = vmatpush1.bf16.msra.mxu0 %v328
  %1189 = vmatprep.subr.bf16.mxu0 0
  %1190 = vmatpush1.bf16.msra.mxu0 %v329
  %1191 = vmatprep.subr.bf16.mxu0 0
  %1192 = vmatpush1.bf16.msra.mxu0 %v330
  %1193 = vmatprep.subr.bf16.mxu0 0
  %1194 = vmatpush1.bf16.msra.mxu0 %v331
  %1195 = vmatprep.subr.bf16.mxu0 0
  %1196 = vmatpush1.bf16.msra.mxu0 0
  %1197 = vmatprep.subr.bf16.mxu0 0
  %1198 = vmatpush1.bf16.msra.mxu0 0
  %1199 = vmatprep.subr.bf16.mxu0 0
  %1200 = vmatpush1.bf16.msra.mxu0 0
  %1201 = vmatprep.subr.bf16.mxu0 0
  %1202 = vmatpush1.bf16.msra.mxu0 0
  %1203 = vmatprep.subr.bf16.mxu0 0
  %1204 = vmatpush1.bf16.msra.mxu0 0
  %1205 = vmatprep.subr.bf16.mxu0 0
  %1206 = vmatpush1.bf16.msra.mxu0 0
  %1207 = vmatprep.subr.bf16.mxu0 0
  %1208 = vmatpush1.bf16.msra.mxu0 0
  %1209 = vmatprep.subr.bf16.mxu0 0
  %1210 = vmatpush1.bf16.msra.mxu0 0
  %1211 = vmatprep.subr.bf16.mxu0 0
  %1212 = vmatpush1.bf16.msra.mxu0 0
  %1213 = vmatprep.subr.bf16.mxu0 0
  %1214 = vmatpush1.bf16.msra.mxu0 0
  %1215 = vmatprep.subr.bf16.mxu0 0
  %1216 = vmatpush1.bf16.msra.mxu0 0
  %1217 = vmatprep.subr.bf16.mxu0 0
  %1218 = vmatpush1.bf16.msra.mxu0 0
  %1219 = vmatprep.mubr.bf16.mxu0 0
  %1220 = vmatmul.mubr.bf16.gmra.mrb[0].mxu0 %v1185
  %v1221 = vpop.f32.mrb[0].mxu0
  %v1222 = vadd.f32 %v57, %v1221
  %v1223 = vpop.f32.mrb[0].mxu0
  %v1224 = vpop.f32.mrb[0].mxu0
  %v1225 = vpop.f32.mrb[0].mxu0
  %1226 = vdwg.mxu0
  %v1227 = vxor.u32 %v1222, 2147483648
  %v1228 = vmul.f32 %v1227, 1.442695
  %v1229 = vpow.pop %v1228
  %v1230 = vadd.f32 %v1229, 1.0
  %v1231 = vrcp.pop %v1230
  %v1232 = vmul.f32 1.0, %v1231
  %v1233 = vtanh.pop %v1222
  %1234 = vrot.lane.b32.xlu0 %v1232, 96
  %v1235 = vpop.permute.xlu0 %1234
  %1236 = vrot.lane.b32.xlu0 %v1233, 64
  %v1237 = vpop.permute.xlu0 %1236
  %1238 = vrot.lane.b32.xlu0 %v1232, 32
  %v1239 = vpop.permute.xlu0 %1238
  %v1240 = vmul.f32 %v1235, %v1175
  %v1241 = vmul.f32 %v1232, %v1237
  %v1242 = vadd.f32 %v1240, %v1241
  %v1243 = vtanh.pop %v1242
  %v1244 = vmul.f32 %v1239, %v1243
  %v1245 = vpack.c.bf16 %v1244, %v1110
  %v1247 = vlaneseq
  %v1248 = vshrl.u32 %v1247, 7
  %v1249 = vsub.s32 0, %v1248
  %v1250 = vrot.slane %v63, %v1249
  %v1256 = vunpack.c.l.b16 %v59
  %v1257 = vunpack.c.l.b16 %v60
  %v1258 = vunpack.c.l.b16 %v61
  %v1259 = vunpack.c.l.b16 %v62
  %v1260 = vpack.c.b16 %v1257, %v1256
  %v1261 = vpack.c.b16 %v1259, %v1258
  %v1265 = vsel %vm184, %v1245, 0
  %1267 = vmatprep.subr.bf16.mxu0 0
  %1268 = vmatpush1.bf16.msra.mxu0 %v1260
  %1269 = vmatprep.subr.bf16.mxu0 0
  %1270 = vmatpush1.bf16.msra.mxu0 %v1261
  %1271 = vmatprep.subr.bf16.mxu0 0
  %1272 = vmatpush1.bf16.msra.mxu0 0
  %1273 = vmatprep.subr.bf16.mxu0 0
  %1274 = vmatpush1.bf16.msra.mxu0 0
  %1275 = vmatprep.subr.bf16.mxu0 0
  %1276 = vmatpush1.bf16.msra.mxu0 0
  %1277 = vmatprep.subr.bf16.mxu0 0
  %1278 = vmatpush1.bf16.msra.mxu0 0
  %1279 = vmatprep.subr.bf16.mxu0 0
  %1280 = vmatpush1.bf16.msra.mxu0 0
  %1281 = vmatprep.subr.bf16.mxu0 0
  %1282 = vmatpush1.bf16.msra.mxu0 0
  %1283 = vmatprep.subr.bf16.mxu0 0
  %1284 = vmatpush1.bf16.msra.mxu0 0
  %1285 = vmatprep.subr.bf16.mxu0 0
  %1286 = vmatpush1.bf16.msra.mxu0 0
  %1287 = vmatprep.subr.bf16.mxu0 0
  %1288 = vmatpush1.bf16.msra.mxu0 0
  %1289 = vmatprep.subr.bf16.mxu0 0
  %1290 = vmatpush1.bf16.msra.mxu0 0
  %1291 = vmatprep.subr.bf16.mxu0 0
  %1292 = vmatpush1.bf16.msra.mxu0 0
  %1293 = vmatprep.subr.bf16.mxu0 0
  %1294 = vmatpush1.bf16.msra.mxu0 0
  %1295 = vmatprep.subr.bf16.mxu0 0
  %1296 = vmatpush1.bf16.msra.mxu0 0
  %1297 = vmatprep.subr.bf16.mxu0 0
  %1298 = vmatpush1.bf16.msra.mxu0 0
  %1299 = vmatprep.mubr.bf16.mxu0 0
  %1300 = vmatmul.mubr.bf16.gmra.mrb[0].mxu0 %v1265
  %v1301 = vpop.f32.mrb[0].mxu0
  %v1302 = vadd.f32 %v1250, %v1301
  %v1303 = vpop.f32.mrb[0].mxu0
  %v1304 = vpop.f32.mrb[0].mxu0
  %v1305 = vadd.f32 %v1250, %v1304
  %v1306 = vpop.f32.mrb[0].mxu0
  %1307 = vdwg.mxu0
  %1308 = vst [vmem:[%s8] sm:$0xff] %v1302
  %1309 = vst [vmem:[%s8 + $0x8] sm:$0xff] %v1305
  // Predicated region
  $region34: #{lstm_predictor_forward.1} parent=0 // pred_check
    _
  $region35: #{lstm_predictor_forward.1} parent=0 // pred_check_branch
    %1311 = sbr.rel (0) target = $region37
  $region36: #{lstm_predictor_forward.1} parent=0 // pred_region
    _
  $region37: #{lstm_predictor_forward.1} parent=0 // pred_fallthru
    _
  // Predicated region
  $region38: #{lstm_predictor_forward.1} parent=0 // pred_check
    _
  $region39: #{lstm_predictor_forward.1} parent=0 // pred_check_branch
    %1313 = sbr.rel (0) target = $region41
  $region40: #{lstm_predictor_forward.1} parent=0 // pred_region
    _
  $region41: #{lstm_predictor_forward.1} parent=0 // pred_fallthru
    _

</llo_original>
